<compile_context>
chip_gen: v5e
topology: v5e:2x2
jax: 0.10.0
libtpu: 0.0.40
codegen_flags: <defaults>
</compile_context>

<pallas_src>
import functools
import math

import jax
import jax.numpy as jnp
from jax.experimental import pallas as pl
from jax.experimental.pallas import tpu as pltpu


def _layernorm(v, g, b, eps=1e-6):
    mu = jnp.mean(v, axis=-1, keepdims=True)
    var = jnp.mean((v - mu) ** 2, axis=-1, keepdims=True)
    return (v - mu) * jax.lax.rsqrt(var + eps) * g + b


def _gelu_exact(h):
    # PyTorch nn.GELU() default (erf formulation), in f32.
    return 0.5 * h * (1.0 + jax.lax.erf(h * (1.0 / math.sqrt(2.0))))


def block_kernel(x_ref, ln1_g, ln1_b, wqkv, bqkv, wproj, bproj,
                 ln2_g, ln2_b, w1, b1, w2, b2, o_ref, y_stage,
                 *, n_heads, t_valid):
    x = x_ref[0].astype(jnp.float32)              # (T, C) f32
    T, C = x.shape
    hd = C // n_heads
    scale = 1.0 / math.sqrt(hd)

    # ---------------- attention branch ----------------
    xn = _layernorm(x, ln1_g[0], ln1_b[0])
    qkv = jnp.dot(xn.astype(jnp.bfloat16), wqkv[...],
                  preferred_element_type=jnp.float32) + bqkv[0]      # (T, 3C) f32

    # Single pass: fold 1/sqrt(hd) into the Q third and cast the whole qkv
    # buffer to bf16 once (halves its VMEM residency; the head loop below
    # only slices bf16 data).
    col = jax.lax.broadcasted_iota(jnp.int32, (1, 3 * C), 1)
    qkv = (qkv * jnp.where(col < C, jnp.float32(scale), jnp.float32(1.0))
           ).astype(jnp.bfloat16)                                    # (T, 3C) bf16

    # Mask for padded key positions (only traced when T was padded).
    if t_valid < T:
        key_mask = jax.lax.broadcasted_iota(jnp.int32, (T, T), 1) < t_valid

    # Per-head attention; head outputs are staged into a (T, C) bf16 scratch
    # buffer so the output projection runs as ONE full-contraction matmul.
    for h in range(n_heads):
        q_h = qkv[:, h * hd:(h + 1) * hd]                       # (T, hd) pre-scaled
        k_h = qkv[:, C + h * hd: C + (h + 1) * hd]
        v_h = qkv[:, 2 * C + h * hd: 2 * C + (h + 1) * hd]

        # q . k^T as a dot_general contraction (no explicit transpose).
        att = jax.lax.dot_general(q_h, k_h, (((1,), (1,)), ((), ())),
                                  preferred_element_type=jnp.float32)  # (T, T) f32
        if t_valid < T:
            att = jnp.where(key_mask, att, jnp.float32(-1e30))
        att = att - jnp.max(att, axis=-1, keepdims=True)
        e = jnp.exp(att)
        p = e * pl.reciprocal(jnp.sum(e, axis=-1, keepdims=True), approx=True)

        head = jnp.dot(p.astype(jnp.bfloat16), v_h,
                       preferred_element_type=jnp.float32)             # (T, hd) f32
        y_stage[:, h * hd:(h + 1) * hd] = head.astype(jnp.bfloat16)

    # Full-K (K = C) output projection: one MXU pass instead of n_heads
    # K=hd passes + f32 accumulator adds.
    x = x + jnp.dot(y_stage[...], wproj[...],
                    preferred_element_type=jnp.float32) + bproj[0]

    # ---------------- MLP branch ----------------
    xn2 = _layernorm(x, ln2_g[0], ln2_b[0])
    hid = jnp.dot(xn2.astype(jnp.bfloat16), w1[...],
                  preferred_element_type=jnp.float32) + b1[0]          # (T, H) f32
    hid = _gelu_exact(hid)
    m = jnp.dot(hid.astype(jnp.bfloat16), w2[...],
                preferred_element_type=jnp.float32) + b2[0]            # (T, C) f32

    o_ref[0] = (x + m).astype(o_ref.dtype)


def _round_up(n, m):
    return ((n + m - 1) // m) * m


def _vmem_limit_bytes(T, C, H, weight_buffers):
    bf16, f32 = 2, 4
    weights = (3 * C * C + C * C + C * H + H * C) * bf16 * weight_buffers
    small = (9 * C + H) * f32 * 2                               # biases + LN params
    io = 2 * (T * C) * f32 * 2                                  # x / out blocks (double-buffered)
    acts = (T * 3 * C * (f32 + bf16)                            # qkv f32 + bf16 copies
            + T * T * (f32 + bf16)                              # att + probs (one head live)
            + T * H * f32                                       # MLP hidden
            + 6 * T * C * f32)                                  # residual / LN / proj temps
    scratch = T * C * bf16                                      # y_stage
    est = weights + small + io + acts + scratch + (2 << 20)
    try:
        phys = int(getattr(pltpu.get_tpu_info(), "vmem_capacity_bytes", 64 << 20))
    except Exception:
        phys = 64 << 20
    cap = int(phys * 0.85)                                      # headroom for compiler scratch
    return int(min(cap, max(32 << 20, est)))


def _build_call(kernel, B, T, C, H, out_dtype, single_buffer_weights):
    w_kwargs = {}
    if single_buffer_weights and hasattr(pl, "Buffered"):
        w_kwargs = dict(pipeline_mode=pl.Buffered(1))

    def full_spec(shape):
        nd = len(shape)
        # Constant block index -> Pallas keeps one resident copy across all B
        # grid steps (no re-DMA); Buffered(1) drops the useless second buffer.
        return pl.BlockSpec(shape, lambda b, _nd=nd: (0,) * _nd, **w_kwargs)

    in_specs = [
        pl.BlockSpec((1, T, C), lambda b: (b, 0, 0)),  # x
        full_spec((1, C)), full_spec((1, C)),          # ln1 gamma/beta (f32)
        full_spec((C, 3 * C)), full_spec((1, 3 * C)),  # qkv W (bf16) / b (f32)
        full_spec((C, C)), full_spec((1, C)),          # proj W (bf16) / b (f32)
        full_spec((1, C)), full_spec((1, C)),          # ln2 gamma/beta (f32)
        full_spec((C, H)), full_spec((1, H)),          # fc1 W (bf16) / b (f32)
        full_spec((H, C)), full_spec((1, C)),          # fc2 W (bf16) / b (f32)
    ]
    return pl.pallas_call(
        kernel,
        out_shape=jax.ShapeDtypeStruct((B, T, C), out_dtype),
        grid=(B,),
        in_specs=in_specs,
        out_specs=pl.BlockSpec((1, T, C), lambda b: (b, 0, 0)),
        scratch_shapes=[pltpu.VMEM((T, C), jnp.bfloat16)],     # head-output staging
        compiler_params=pltpu.CompilerParams(
            dimension_semantics=("parallel",),
            vmem_limit_bytes=_vmem_limit_bytes(
                T, C, H, 1 if single_buffer_weights else 2)),
    )


def vit_block(x, params, n_heads):
    B, T, C = x.shape
    H = params["w1"].shape[1]
    assert C % n_heads == 0

    # Pad T to a sublane / MXU-friendly multiple (e.g. ViT's 197 -> 256);
    # padded key columns are masked in-kernel, padded query rows sliced off.
    T_pad = _round_up(T, 128) if T >= 128 else _round_up(T, 8)
    x_in = x if T_pad == T else jnp.pad(x, ((0, 0), (0, T_pad - T), (0, 0)))

    kernel = functools.partial(block_kernel, n_heads=n_heads, t_valid=T)
    args = (x_in, params["ln1_g"], params["ln1_b"], params["wqkv"], params["bqkv"],
            params["wproj"], params["bproj"], params["ln2_g"], params["ln2_b"],
            params["w1"], params["b1"], params["w2"], params["b2"])

    try:
        out = _build_call(kernel, B, T_pad, C, H, x.dtype, True)(*args)
    except Exception:
        # Fallback for JAX builds without BlockSpec pipeline_mode / Buffered(1).
        out = _build_call(kernel, B, T_pad, C, H, x.dtype, False)(*args)

    return out if T_pad == T else out[:, :T, :]


# ---------------- pure-JAX reference (same math / same bf16 cast points) ----------------
def reference_block(x, p, n_heads):
    B, T, C = x.shape
    hd = C // n_heads
    scale = 1.0 / math.sqrt(hd)

    def ln(v, g, b):
        mu = v.mean(-1, keepdims=True)
        var = ((v - mu) ** 2).mean(-1, keepdims=True)
        return (v - mu) / jnp.sqrt(var + 1e-6) * g + b

    xf = x.astype(jnp.float32)
    xn = ln(xf, p["ln1_g"][0], p["ln1_b"][0])
    qkv = jnp.dot(xn.astype(jnp.bfloat16), p["wqkv"],
                  preferred_element_type=jnp.float32) + p["bqkv"][0]
    q, k, v = jnp.split(qkv, 3, axis=-1)
    q = (q * scale).astype(jnp.bfloat16).reshape(B, T, n_heads, hd).transpose(0, 2, 1, 3)
    k = k.astype(jnp.bfloat16).reshape(B, T, n_heads, hd).transpose(0, 2, 1, 3)
    v = v.astype(jnp.bfloat16).reshape(B, T, n_heads, hd).transpose(0, 2, 1, 3)
    att = jnp.einsum("bhtd,bhsd->bhts", q, k, preferred_element_type=jnp.float32)
    att = jax.nn.softmax(att, axis=-1)
    y = jnp.einsum("bhts,bhsd->bhtd", att.astype(jnp.bfloat16), v,
                   preferred_element_type=jnp.float32)
    y = y.transpose(0, 2, 1, 3).reshape(B, T, C)
    xf = xf + jnp.dot(y.astype(jnp.bfloat16), p["wproj"],
                      preferred_element_type=jnp.float32) + p["bproj"][0]
    xn2 = ln(xf, p["ln2_g"][0], p["ln2_b"][0])
    h = jnp.dot(xn2.astype(jnp.bfloat16), p["w1"],
                preferred_element_type=jnp.float32) + p["b1"][0]
    h = 0.5 * h * (1.0 + jax.lax.erf(h / math.sqrt(2.0)))
    xf = xf + jnp.dot(h.astype(jnp.bfloat16), p["w2"],
                      preferred_element_type=jnp.float32) + p["b2"][0]
    return xf.astype(x.dtype)


if __name__ == "__main__":
    B, T, C = 2, 8, 32
    n_heads = 4
    mlp_ratio = 4
    H = int(C * mlp_ratio)

    key = jax.random.PRNGKey(0)
    ks = jax.random.split(key, 12)

    params = {
        "ln1_g": 1.0 + 0.1 * jax.random.normal(ks[0], (1, C), jnp.float32),
        "ln1_b": 0.1 * jax.random.normal(ks[1], (1, C), jnp.float32),
        "wqkv": (0.02 * jax.random.normal(ks[2], (C, 3 * C), jnp.float32)).astype(jnp.bfloat16),
        "bqkv": 0.02 * jax.random.normal(ks[3], (1, 3 * C), jnp.float32),
        "wproj": (0.02 * jax.random.normal(ks[4], (C, C), jnp.float32)).astype(jnp.bfloat16),
        "bproj": 0.02 * jax.random.normal(ks[5], (1, C), jnp.float32),
        "ln2_g": 1.0 + 0.1 * jax.random.normal(ks[6], (1, C), jnp.float32),
        "ln2_b": 0.1 * jax.random.normal(ks[7], (1, C), jnp.float32),
        "w1": (0.02 * jax.random.normal(ks[8], (C, H), jnp.float32)).astype(jnp.bfloat16),
        "b1": 0.02 * jax.random.normal(ks[9], (1, H), jnp.float32),
        "w2": (0.02 * jax.random.normal(ks[10], (H, C), jnp.float32)).astype(jnp.bfloat16),
        "b2": 0.02 * jax.random.normal(ks[11], (1, C), jnp.float32),
    }

    x = jax.random.normal(jax.random.PRNGKey(1), (B, T, C), jnp.float32)

    out = jax.block_until_ready(vit_block(x, params, n_heads))
    ref = jax.block_until_ready(reference_block(x, params, n_heads))

    assert out.shape == (B, T, C)
    max_err = float(jnp.abs(out - ref).max())
    assert jnp.allclose(out, ref, atol=1e-2, rtol=1e-2), max_err
    print("KERNEL_OK")
</pallas_src>

<mosaic_0001>
module attributes {stable_mosaic.version = 11 : i64} {
  func.func @block_kernel(%arg0: i32, %arg1: memref<1x8x32xf32, #tpu.memory_space<vmem>>, %arg2: memref<1x32xf32, #tpu.memory_space<vmem>>, %arg3: memref<1x32xf32, #tpu.memory_space<vmem>>, %arg4: memref<32x96xbf16, #tpu.memory_space<vmem>>, %arg5: memref<1x96xf32, #tpu.memory_space<vmem>>, %arg6: memref<32x32xbf16, #tpu.memory_space<vmem>>, %arg7: memref<1x32xf32, #tpu.memory_space<vmem>>, %arg8: memref<1x32xf32, #tpu.memory_space<vmem>>, %arg9: memref<1x32xf32, #tpu.memory_space<vmem>>, %arg10: memref<32x128xbf16, #tpu.memory_space<vmem>>, %arg11: memref<1x128xf32, #tpu.memory_space<vmem>>, %arg12: memref<128x32xbf16, #tpu.memory_space<vmem>>, %arg13: memref<1x32xf32, #tpu.memory_space<vmem>>, %arg14: memref<1x8x32xf32, #tpu.memory_space<vmem>>, %arg15: memref<8x32xbf16, #tpu.memory_space<vmem>>) attributes {dimension_semantics = [#tpu.dimension_semantics<parallel>], iteration_bounds = array<i64: 2>, scalar_prefetch = 0 : i64, scratch_operands = 1 : i64, tpu.core_type = #tpu.core_type<tc>, window_params = [{transform_indices = @transform_0, window_bounds = array<i64: 1, 8, 32>}, {pipeline_mode = #tpu.pipeline_mode<synchronous>, transform_indices = @transform_1, window_bounds = array<i64: 1, 32>}, {pipeline_mode = #tpu.pipeline_mode<synchronous>, transform_indices = @transform_2, window_bounds = array<i64: 1, 32>}, {pipeline_mode = #tpu.pipeline_mode<synchronous>, transform_indices = @transform_3, window_bounds = array<i64: 32, 96>}, {pipeline_mode = #tpu.pipeline_mode<synchronous>, transform_indices = @transform_4, window_bounds = array<i64: 1, 96>}, {pipeline_mode = #tpu.pipeline_mode<synchronous>, transform_indices = @transform_5, window_bounds = array<i64: 32, 32>}, {pipeline_mode = #tpu.pipeline_mode<synchronous>, transform_indices = @transform_6, window_bounds = array<i64: 1, 32>}, {pipeline_mode = #tpu.pipeline_mode<synchronous>, transform_indices = @transform_7, window_bounds = array<i64: 1, 32>}, {pipeline_mode = #tpu.pipeline_mode<synchronous>, transform_indices = @transform_8, window_bounds = array<i64: 1, 32>}, {pipeline_mode = #tpu.pipeline_mode<synchronous>, transform_indices = @transform_9, window_bounds = array<i64: 32, 128>}, {pipeline_mode = #tpu.pipeline_mode<synchronous>, transform_indices = @transform_10, window_bounds = array<i64: 1, 128>}, {pipeline_mode = #tpu.pipeline_mode<synchronous>, transform_indices = @transform_11, window_bounds = array<i64: 128, 32>}, {pipeline_mode = #tpu.pipeline_mode<synchronous>, transform_indices = @transform_12, window_bounds = array<i64: 1, 32>}, {transform_indices = @transform_13, window_bounds = array<i64: 1, 8, 32>}]} {
    %c0 = arith.constant 0 : index
    %c0_0 = arith.constant 0 : index
    %c0_1 = arith.constant 0 : index
    %0 = vector.load %arg1[%c0, %c0_0, %c0_1] : memref<1x8x32xf32, #tpu.memory_space<vmem>>, vector<1x8x32xf32>
    %1 = vector.shape_cast %0 : vector<1x8x32xf32> to vector<8x32xf32>
    %c0_2 = arith.constant 0 : index
    %c0_3 = arith.constant 0 : index
    %2 = vector.load %arg2[%c0_2, %c0_3] : memref<1x32xf32, #tpu.memory_space<vmem>>, vector<1x32xf32>
    %3 = vector.shape_cast %2 : vector<1x32xf32> to vector<32xf32>
    %c0_4 = arith.constant 0 : index
    %c0_5 = arith.constant 0 : index
    %4 = vector.load %arg3[%c0_4, %c0_5] : memref<1x32xf32, #tpu.memory_space<vmem>>, vector<1x32xf32>
    %5 = vector.shape_cast %4 : vector<1x32xf32> to vector<32xf32>
    %cst = arith.constant dense<0.000000e+00> : vector<8xf32>
    %6 = vector.multi_reduction <add>, %1, %cst [1] : vector<8x32xf32> to vector<8xf32>
    %7 = vector.shape_cast %6 : vector<8xf32> to vector<8x1xf32>
    %cst_6 = arith.constant 3.200000e+01 : f32
    %8 = vector.broadcast %cst_6 : f32 to vector<8x1xf32>
    %9 = arith.divf %7, %8 : vector<8x1xf32>
    %10 = vector.broadcast %9 : vector<8x1xf32> to vector<8x32xf32>
    %11 = arith.subf %1, %10 : vector<8x32xf32>
    %12 = arith.mulf %11, %11 : vector<8x32xf32>
    %cst_7 = arith.constant dense<0.000000e+00> : vector<8xf32>
    %13 = vector.multi_reduction <add>, %12, %cst_7 [1] : vector<8x32xf32> to vector<8xf32>
    %14 = vector.shape_cast %13 : vector<8xf32> to vector<8x1xf32>
    %cst_8 = arith.constant 3.200000e+01 : f32
    %15 = vector.broadcast %cst_8 : f32 to vector<8x1xf32>
    %16 = arith.divf %14, %15 : vector<8x1xf32>
    %17 = vector.broadcast %9 : vector<8x1xf32> to vector<8x32xf32>
    %18 = arith.subf %1, %17 : vector<8x32xf32>
    %cst_9 = arith.constant 9.99999997E-7 : f32
    %19 = vector.broadcast %cst_9 : f32 to vector<8x1xf32>
    %20 = arith.addf %16, %19 : vector<8x1xf32>
    %21 = math.rsqrt %20 : vector<8x1xf32>
    %22 = vector.broadcast %21 : vector<8x1xf32> to vector<8x32xf32>
    %23 = arith.mulf %18, %22 : vector<8x32xf32>
    %24 = vector.shape_cast %3 : vector<32xf32> to vector<1x32xf32>
    %25 = vector.broadcast %24 : vector<1x32xf32> to vector<8x32xf32>
    %26 = arith.mulf %23, %25 : vector<8x32xf32>
    %27 = vector.shape_cast %5 : vector<32xf32> to vector<1x32xf32>
    %28 = vector.broadcast %27 : vector<1x32xf32> to vector<8x32xf32>
    %29 = arith.addf %26, %28 : vector<8x32xf32>
    %30 = arith.truncf %29 : vector<8x32xf32> to vector<8x32xbf16>
    %c0_10 = arith.constant 0 : index
    %c0_11 = arith.constant 0 : index
    %31 = vector.load %arg4[%c0_10, %c0_11] : memref<32x96xbf16, #tpu.memory_space<vmem>>, vector<32x96xbf16>
    %cst_12 = arith.constant dense<0.000000e+00> : vector<8x96xf32>
    %32 = tpu.matmul %30, %31, %cst_12 {dimension_numbers = #tpu.dot_dimension_numbers<[1], [0], [0], [1], [0, 0, 1, 1], [], []>} : vector<8x32xbf16>, vector<32x96xbf16>, vector<8x96xf32> -> vector<8x96xf32>
    %c0_13 = arith.constant 0 : index
    %c0_14 = arith.constant 0 : index
    %33 = vector.load %arg5[%c0_13, %c0_14] : memref<1x96xf32, #tpu.memory_space<vmem>>, vector<1x96xf32>
    %34 = vector.shape_cast %33 : vector<1x96xf32> to vector<96xf32>
    %35 = vector.shape_cast %34 : vector<96xf32> to vector<1x96xf32>
    %36 = vector.broadcast %35 : vector<1x96xf32> to vector<8x96xf32>
    %37 = arith.addf %32, %36 : vector<8x96xf32>
    %38 = tpu.iota {dimensions = array<i32: 1>} : vector<1x96xi32>
    %c32_i32 = arith.constant 32 : i32
    %39 = vector.broadcast %c32_i32 : i32 to vector<1x96xi32>
    %40 = arith.cmpi slt, %38, %39 : vector<1x96xi32>
    %cst_15 = arith.constant 0.353553385 : f32
    %cst_16 = arith.constant 1.000000e+00 : f32
    %41 = vector.broadcast %cst_15 : f32 to vector<1x96xf32>
    %42 = vector.broadcast %cst_16 : f32 to vector<1x96xf32>
    %43 = arith.select %40, %41, %42 : vector<1x96xi1>, vector<1x96xf32>
    %44 = vector.broadcast %43 : vector<1x96xf32> to vector<8x96xf32>
    %45 = arith.mulf %37, %44 : vector<8x96xf32>
    %46 = arith.truncf %45 : vector<8x96xf32> to vector<8x96xbf16>
    %47 = vector.extract_strided_slice %46 {offsets = [0, 0], sizes = [8, 8], strides = [1, 1]} : vector<8x96xbf16> to vector<8x8xbf16>
    %48 = vector.extract_strided_slice %46 {offsets = [0, 32], sizes = [8, 8], strides = [1, 1]} : vector<8x96xbf16> to vector<8x8xbf16>
    %49 = vector.extract_strided_slice %46 {offsets = [0, 64], sizes = [8, 8], strides = [1, 1]} : vector<8x96xbf16> to vector<8x8xbf16>
    %cst_17 = arith.constant dense<0.000000e+00> : vector<8x8xf32>
    %50 = tpu.matmul %47, %48, %cst_17 {dimension_numbers = #tpu.dot_dimension_numbers<[1], [1], [0], [0], [0, 0, 1, 0], [], []>} : vector<8x8xbf16>, vector<8x8xbf16>, vector<8x8xf32> -> vector<8x8xf32>
    %cst_18 = arith.constant dense<0xFF800000> : vector<8xf32>
    %51 = vector.multi_reduction <maximumf>, %50, %cst_18 [1] : vector<8x8xf32> to vector<8xf32>
    %52 = vector.shape_cast %51 : vector<8xf32> to vector<8x1xf32>
    %53 = vector.broadcast %52 : vector<8x1xf32> to vector<8x8xf32>
    %54 = arith.subf %50, %53 : vector<8x8xf32>
    %55 = math.exp %54 : vector<8x8xf32>
    %cst_19 = arith.constant dense<0.000000e+00> : vector<8xf32>
    %56 = vector.multi_reduction <add>, %55, %cst_19 [1] : vector<8x8xf32> to vector<8xf32>
    %57 = vector.shape_cast %56 : vector<8xf32> to vector<8x1xf32>
    %58 = tpu.reciprocal %57 {approx = true} : vector<8x1xf32> -> vector<8x1xf32>
    %59 = vector.broadcast %58 : vector<8x1xf32> to vector<8x8xf32>
    %60 = arith.mulf %55, %59 : vector<8x8xf32>
    %61 = arith.truncf %60 : vector<8x8xf32> to vector<8x8xbf16>
    %cst_20 = arith.constant dense<0.000000e+00> : vector<8x8xf32>
    %62 = tpu.matmul %61, %49, %cst_20 {dimension_numbers = #tpu.dot_dimension_numbers<[1], [0], [0], [1], [0, 0, 1, 1], [], []>} : vector<8x8xbf16>, vector<8x8xbf16>, vector<8x8xf32> -> vector<8x8xf32>
    %63 = arith.truncf %62 : vector<8x8xf32> to vector<8x8xbf16>
    %c0_21 = arith.constant 0 : index
    %c0_22 = arith.constant 0 : index
    %64 = vector.load %arg15[%c0_21, %c0_22] : memref<8x32xbf16, #tpu.memory_space<vmem>>, vector<8x8xbf16>
    tpu.vector_store %arg15[%c0_21, %c0_22], %63 {strides = array<i32>} : memref<8x32xbf16, #tpu.memory_space<vmem>>, vector<8x8xbf16>,
    %65 = vector.extract_strided_slice %46 {offsets = [0, 8], sizes = [8, 8], strides = [1, 1]} : vector<8x96xbf16> to vector<8x8xbf16>
    %66 = vector.extract_strided_slice %46 {offsets = [0, 40], sizes = [8, 8], strides = [1, 1]} : vector<8x96xbf16> to vector<8x8xbf16>
    %67 = vector.extract_strided_slice %46 {offsets = [0, 72], sizes = [8, 8], strides = [1, 1]} : vector<8x96xbf16> to vector<8x8xbf16>
    %cst_23 = arith.constant dense<0.000000e+00> : vector<8x8xf32>
    %68 = tpu.matmul %65, %66, %cst_23 {dimension_numbers = #tpu.dot_dimension_numbers<[1], [1], [0], [0], [0, 0, 1, 0], [], []>} : vector<8x8xbf16>, vector<8x8xbf16>, vector<8x8xf32> -> vector<8x8xf32>
    %cst_24 = arith.constant dense<0xFF800000> : vector<8xf32>
    %69 = vector.multi_reduction <maximumf>, %68, %cst_24 [1] : vector<8x8xf32> to vector<8xf32>
    %70 = vector.shape_cast %69 : vector<8xf32> to vector<8x1xf32>
    %71 = vector.broadcast %70 : vector<8x1xf32> to vector<8x8xf32>
    %72 = arith.subf %68, %71 : vector<8x8xf32>
    %73 = math.exp %72 : vector<8x8xf32>
    %cst_25 = arith.constant dense<0.000000e+00> : vector<8xf32>
    %74 = vector.multi_reduction <add>, %73, %cst_25 [1] : vector<8x8xf32> to vector<8xf32>
    %75 = vector.shape_cast %74 : vector<8xf32> to vector<8x1xf32>
    %76 = tpu.reciprocal %75 {approx = true} : vector<8x1xf32> -> vector<8x1xf32>
    %77 = vector.broadcast %76 : vector<8x1xf32> to vector<8x8xf32>
    %78 = arith.mulf %73, %77 : vector<8x8xf32>
    %79 = arith.truncf %78 : vector<8x8xf32> to vector<8x8xbf16>
    %cst_26 = arith.constant dense<0.000000e+00> : vector<8x8xf32>
    %80 = tpu.matmul %79, %67, %cst_26 {dimension_numbers = #tpu.dot_dimension_numbers<[1], [0], [0], [1], [0, 0, 1, 1], [], []>} : vector<8x8xbf16>, vector<8x8xbf16>, vector<8x8xf32> -> vector<8x8xf32>
    %81 = arith.truncf %80 : vector<8x8xf32> to vector<8x8xbf16>
    %c0_27 = arith.constant 0 : index
    %c8 = arith.constant 8 : index
    %82 = vector.load %arg15[%c0_27, %c8] : memref<8x32xbf16, #tpu.memory_space<vmem>>, vector<8x8xbf16>
    tpu.vector_store %arg15[%c0_27, %c8], %81 {strides = array<i32>} : memref<8x32xbf16, #tpu.memory_space<vmem>>, vector<8x8xbf16>,
    %83 = vector.extract_strided_slice %46 {offsets = [0, 16], sizes = [8, 8], strides = [1, 1]} : vector<8x96xbf16> to vector<8x8xbf16>
    %84 = vector.extract_strided_slice %46 {offsets = [0, 48], sizes = [8, 8], strides = [1, 1]} : vector<8x96xbf16> to vector<8x8xbf16>
    %85 = vector.extract_strided_slice %46 {offsets = [0, 80], sizes = [8, 8], strides = [1, 1]} : vector<8x96xbf16> to vector<8x8xbf16>
    %cst_28 = arith.constant dense<0.000000e+00> : vector<8x8xf32>
    %86 = tpu.matmul %83, %84, %cst_28 {dimension_numbers = #tpu.dot_dimension_numbers<[1], [1], [0], [0], [0, 0, 1, 0], [], []>} : vector<8x8xbf16>, vector<8x8xbf16>, vector<8x8xf32> -> vector<8x8xf32>
    %cst_29 = arith.constant dense<0xFF800000> : vector<8xf32>
    %87 = vector.multi_reduction <maximumf>, %86, %cst_29 [1] : vector<8x8xf32> to vector<8xf32>
    %88 = vector.shape_cast %87 : vector<8xf32> to vector<8x1xf32>
    %89 = vector.broadcast %88 : vector<8x1xf32> to vector<8x8xf32>
    %90 = arith.subf %86, %89 : vector<8x8xf32>
    %91 = math.exp %90 : vector<8x8xf32>
    %cst_30 = arith.constant dense<0.000000e+00> : vector<8xf32>
    %92 = vector.multi_reduction <add>, %91, %cst_30 [1] : vector<8x8xf32> to vector<8xf32>
    %93 = vector.shape_cast %92 : vector<8xf32> to vector<8x1xf32>
    %94 = tpu.reciprocal %93 {approx = true} : vector<8x1xf32> -> vector<8x1xf32>
    %95 = vector.broadcast %94 : vector<8x1xf32> to vector<8x8xf32>
    %96 = arith.mulf %91, %95 : vector<8x8xf32>
    %97 = arith.truncf %96 : vector<8x8xf32> to vector<8x8xbf16>
    %cst_31 = arith.constant dense<0.000000e+00> : vector<8x8xf32>
    %98 = tpu.matmul %97, %85, %cst_31 {dimension_numbers = #tpu.dot_dimension_numbers<[1], [0], [0], [1], [0, 0, 1, 1], [], []>} : vector<8x8xbf16>, vector<8x8xbf16>, vector<8x8xf32> -> vector<8x8xf32>
    %99 = arith.truncf %98 : vector<8x8xf32> to vector<8x8xbf16>
    %c0_32 = arith.constant 0 : index
    %c16 = arith.constant 16 : index
    %100 = vector.load %arg15[%c0_32, %c16] : memref<8x32xbf16, #tpu.memory_space<vmem>>, vector<8x8xbf16>
    tpu.vector_store %arg15[%c0_32, %c16], %99 {strides = array<i32>} : memref<8x32xbf16, #tpu.memory_space<vmem>>, vector<8x8xbf16>,
    %101 = vector.extract_strided_slice %46 {offsets = [0, 24], sizes = [8, 8], strides = [1, 1]} : vector<8x96xbf16> to vector<8x8xbf16>
    %102 = vector.extract_strided_slice %46 {offsets = [0, 56], sizes = [8, 8], strides = [1, 1]} : vector<8x96xbf16> to vector<8x8xbf16>
    %103 = vector.extract_strided_slice %46 {offsets = [0, 88], sizes = [8, 8], strides = [1, 1]} : vector<8x96xbf16> to vector<8x8xbf16>
    %cst_33 = arith.constant dense<0.000000e+00> : vector<8x8xf32>
    %104 = tpu.matmul %101, %102, %cst_33 {dimension_numbers = #tpu.dot_dimension_numbers<[1], [1], [0], [0], [0, 0, 1, 0], [], []>} : vector<8x8xbf16>, vector<8x8xbf16>, vector<8x8xf32> -> vector<8x8xf32>
    %cst_34 = arith.constant dense<0xFF800000> : vector<8xf32>
    %105 = vector.multi_reduction <maximumf>, %104, %cst_34 [1] : vector<8x8xf32> to vector<8xf32>
    %106 = vector.shape_cast %105 : vector<8xf32> to vector<8x1xf32>
    %107 = vector.broadcast %106 : vector<8x1xf32> to vector<8x8xf32>
    %108 = arith.subf %104, %107 : vector<8x8xf32>
    %109 = math.exp %108 : vector<8x8xf32>
    %cst_35 = arith.constant dense<0.000000e+00> : vector<8xf32>
    %110 = vector.multi_reduction <add>, %109, %cst_35 [1] : vector<8x8xf32> to vector<8xf32>
    %111 = vector.shape_cast %110 : vector<8xf32> to vector<8x1xf32>
    %112 = tpu.reciprocal %111 {approx = true} : vector<8x1xf32> -> vector<8x1xf32>
    %113 = vector.broadcast %112 : vector<8x1xf32> to vector<8x8xf32>
    %114 = arith.mulf %109, %113 : vector<8x8xf32>
    %115 = arith.truncf %114 : vector<8x8xf32> to vector<8x8xbf16>
    %cst_36 = arith.constant dense<0.000000e+00> : vector<8x8xf32>
    %116 = tpu.matmul %115, %103, %cst_36 {dimension_numbers = #tpu.dot_dimension_numbers<[1], [0], [0], [1], [0, 0, 1, 1], [], []>} : vector<8x8xbf16>, vector<8x8xbf16>, vector<8x8xf32> -> vector<8x8xf32>
    %117 = arith.truncf %116 : vector<8x8xf32> to vector<8x8xbf16>
    %c0_37 = arith.constant 0 : index
    %c24 = arith.constant 24 : index
    %118 = vector.load %arg15[%c0_37, %c24] : memref<8x32xbf16, #tpu.memory_space<vmem>>, vector<8x8xbf16>
    tpu.vector_store %arg15[%c0_37, %c24], %117 {strides = array<i32>} : memref<8x32xbf16, #tpu.memory_space<vmem>>, vector<8x8xbf16>,
    %c0_38 = arith.constant 0 : index
    %c0_39 = arith.constant 0 : index
    %119 = vector.load %arg15[%c0_38, %c0_39] : memref<8x32xbf16, #tpu.memory_space<vmem>>, vector<8x32xbf16>
    %c0_40 = arith.constant 0 : index
    %c0_41 = arith.constant 0 : index
    %120 = vector.load %arg6[%c0_40, %c0_41] : memref<32x32xbf16, #tpu.memory_space<vmem>>, vector<32x32xbf16>
    %cst_42 = arith.constant dense<0.000000e+00> : vector<8x32xf32>
    %121 = tpu.matmul %119, %120, %cst_42 {dimension_numbers = #tpu.dot_dimension_numbers<[1], [0], [0], [1], [0, 0, 1, 1], [], []>} : vector<8x32xbf16>, vector<32x32xbf16>, vector<8x32xf32> -> vector<8x32xf32>
    %122 = arith.addf %1, %121 : vector<8x32xf32>
    %c0_43 = arith.constant 0 : index
    %c0_44 = arith.constant 0 : index
    %123 = vector.load %arg7[%c0_43, %c0_44] : memref<1x32xf32, #tpu.memory_space<vmem>>, vector<1x32xf32>
    %124 = vector.shape_cast %123 : vector<1x32xf32> to vector<32xf32>
    %125 = vector.shape_cast %124 : vector<32xf32> to vector<1x32xf32>
    %126 = vector.broadcast %125 : vector<1x32xf32> to vector<8x32xf32>
    %127 = arith.addf %122, %126 : vector<8x32xf32>
    %c0_45 = arith.constant 0 : index
    %c0_46 = arith.constant 0 : index
    %128 = vector.load %arg8[%c0_45, %c0_46] : memref<1x32xf32, #tpu.memory_space<vmem>>, vector<1x32xf32>
    %129 = vector.shape_cast %128 : vector<1x32xf32> to vector<32xf32>
    %c0_47 = arith.constant 0 : index
    %c0_48 = arith.constant 0 : index
    %130 = vector.load %arg9[%c0_47, %c0_48] : memref<1x32xf32, #tpu.memory_space<vmem>>, vector<1x32xf32>
    %131 = vector.shape_cast %130 : vector<1x32xf32> to vector<32xf32>
    %cst_49 = arith.constant dense<0.000000e+00> : vector<8xf32>
    %132 = vector.multi_reduction <add>, %127, %cst_49 [1] : vector<8x32xf32> to vector<8xf32>
    %133 = vector.shape_cast %132 : vector<8xf32> to vector<8x1xf32>
    %cst_50 = arith.constant 3.200000e+01 : f32
    %134 = vector.broadcast %cst_50 : f32 to vector<8x1xf32>
    %135 = arith.divf %133, %134 : vector<8x1xf32>
    %136 = vector.broadcast %135 : vector<8x1xf32> to vector<8x32xf32>
    %137 = arith.subf %127, %136 : vector<8x32xf32>
    %138 = arith.mulf %137, %137 : vector<8x32xf32>
    %cst_51 = arith.constant dense<0.000000e+00> : vector<8xf32>
    %139 = vector.multi_reduction <add>, %138, %cst_51 [1] : vector<8x32xf32> to vector<8xf32>
    %140 = vector.shape_cast %139 : vector<8xf32> to vector<8x1xf32>
    %cst_52 = arith.constant 3.200000e+01 : f32
    %141 = vector.broadcast %cst_52 : f32 to vector<8x1xf32>
    %142 = arith.divf %140, %141 : vector<8x1xf32>
    %143 = vector.broadcast %135 : vector<8x1xf32> to vector<8x32xf32>
    %144 = arith.subf %127, %143 : vector<8x32xf32>
    %cst_53 = arith.constant 9.99999997E-7 : f32
    %145 = vector.broadcast %cst_53 : f32 to vector<8x1xf32>
    %146 = arith.addf %142, %145 : vector<8x1xf32>
    %147 = math.rsqrt %146 : vector<8x1xf32>
    %148 = vector.broadcast %147 : vector<8x1xf32> to vector<8x32xf32>
    %149 = arith.mulf %144, %148 : vector<8x32xf32>
    %150 = vector.shape_cast %129 : vector<32xf32> to vector<1x32xf32>
    %151 = vector.broadcast %150 : vector<1x32xf32> to vector<8x32xf32>
    %152 = arith.mulf %149, %151 : vector<8x32xf32>
    %153 = vector.shape_cast %131 : vector<32xf32> to vector<1x32xf32>
    %154 = vector.broadcast %153 : vector<1x32xf32> to vector<8x32xf32>
    %155 = arith.addf %152, %154 : vector<8x32xf32>
    %156 = arith.truncf %155 : vector<8x32xf32> to vector<8x32xbf16>
    %c0_54 = arith.constant 0 : index
    %c0_55 = arith.constant 0 : index
    %157 = vector.load %arg10[%c0_54, %c0_55] : memref<32x128xbf16, #tpu.memory_space<vmem>>, vector<32x128xbf16>
    %cst_56 = arith.constant dense<0.000000e+00> : vector<8x128xf32>
    %158 = tpu.matmul %156, %157, %cst_56 {dimension_numbers = #tpu.dot_dimension_numbers<[1], [0], [0], [1], [0, 0, 1, 1], [], []>} : vector<8x32xbf16>, vector<32x128xbf16>, vector<8x128xf32> -> vector<8x128xf32>
    %c0_57 = arith.constant 0 : index
    %c0_58 = arith.constant 0 : index
    %159 = vector.load %arg11[%c0_57, %c0_58] : memref<1x128xf32, #tpu.memory_space<vmem>>, vector<1x128xf32>
    %160 = vector.shape_cast %159 : vector<1x128xf32> to vector<128xf32>
    %161 = vector.shape_cast %160 : vector<128xf32> to vector<1x128xf32>
    %162 = vector.broadcast %161 : vector<1x128xf32> to vector<8x128xf32>
    %163 = arith.addf %158, %162 : vector<8x128xf32>
    %cst_59 = arith.constant 5.000000e-01 : f32
    %164 = vector.broadcast %cst_59 : f32 to vector<8x128xf32>
    %165 = arith.mulf %164, %163 : vector<8x128xf32>
    %cst_60 = arith.constant 0.707106769 : f32
    %166 = vector.broadcast %cst_60 : f32 to vector<8x128xf32>
    %167 = arith.mulf %163, %166 : vector<8x128xf32>
    %168 = math.erf %167 : vector<8x128xf32>
    %cst_61 = arith.constant 1.000000e+00 : f32
    %169 = vector.broadcast %cst_61 : f32 to vector<8x128xf32>
    %170 = arith.addf %169, %168 : vector<8x128xf32>
    %171 = arith.mulf %165, %170 : vector<8x128xf32>
    %172 = arith.truncf %171 : vector<8x128xf32> to vector<8x128xbf16>
    %c0_62 = arith.constant 0 : index
    %c0_63 = arith.constant 0 : index
    %173 = vector.load %arg12[%c0_62, %c0_63] : memref<128x32xbf16, #tpu.memory_space<vmem>>, vector<128x32xbf16>
    %cst_64 = arith.constant dense<0.000000e+00> : vector<8x32xf32>
    %174 = tpu.matmul %172, %173, %cst_64 {dimension_numbers = #tpu.dot_dimension_numbers<[1], [0], [0], [1], [0, 0, 1, 1], [], []>} : vector<8x128xbf16>, vector<128x32xbf16>, vector<8x32xf32> -> vector<8x32xf32>
    %c0_65 = arith.constant 0 : index
    %c0_66 = arith.constant 0 : index
    %175 = vector.load %arg13[%c0_65, %c0_66] : memref<1x32xf32, #tpu.memory_space<vmem>>, vector<1x32xf32>
    %176 = vector.shape_cast %175 : vector<1x32xf32> to vector<32xf32>
    %177 = vector.shape_cast %176 : vector<32xf32> to vector<1x32xf32>
    %178 = vector.broadcast %177 : vector<1x32xf32> to vector<8x32xf32>
    %179 = arith.addf %174, %178 : vector<8x32xf32>
    %180 = arith.addf %127, %179 : vector<8x32xf32>
    %c0_67 = arith.constant 0 : index
    %c0_68 = arith.constant 0 : index
    %c0_69 = arith.constant 0 : index
    %181 = vector.load %arg14[%c0_67, %c0_68, %c0_69] : memref<1x8x32xf32, #tpu.memory_space<vmem>>, vector<1x8x32xf32>
    %182 = vector.shape_cast %181 : vector<1x8x32xf32> to vector<8x32xf32>
    %183 = vector.shape_cast %180 : vector<8x32xf32> to vector<1x8x32xf32>
    tpu.vector_store %arg14[%c0_67, %c0_68, %c0_69], %183 {strides = array<i32>} : memref<1x8x32xf32, #tpu.memory_space<vmem>>, vector<1x8x32xf32>,
    return
  }
  func.func @transform_0(%arg0: i32) -> (i32, i32, i32) {
    %c0_i32 = arith.constant 0 : i32
    %c0_i32_0 = arith.constant 0 : i32
    %c0_i32_1 = arith.constant 0 : i32
    return %arg0, %c0_i32, %c0_i32_0 : i32, i32, i32
  }
  func.func @transform_1(%arg0: i32) -> (i32, i32) {
    %c0_i32 = arith.constant 0 : i32
    %c0_i32_0 = arith.constant 0 : i32
    %c0_i32_1 = arith.constant 0 : i32
    return %c0_i32, %c0_i32_0 : i32, i32
  }
  func.func @transform_2(%arg0: i32) -> (i32, i32) {
    %c0_i32 = arith.constant 0 : i32
    %c0_i32_0 = arith.constant 0 : i32
    %c0_i32_1 = arith.constant 0 : i32
    return %c0_i32, %c0_i32_0 : i32, i32
  }
  func.func @transform_3(%arg0: i32) -> (i32, i32) {
    %c0_i32 = arith.constant 0 : i32
    %c0_i32_0 = arith.constant 0 : i32
    %c0_i32_1 = arith.constant 0 : i32
    return %c0_i32, %c0_i32_0 : i32, i32
  }
  func.func @transform_4(%arg0: i32) -> (i32, i32) {
    %c0_i32 = arith.constant 0 : i32
    %c0_i32_0 = arith.constant 0 : i32
    %c0_i32_1 = arith.constant 0 : i32
    return %c0_i32, %c0_i32_0 : i32, i32
  }
  func.func @transform_5(%arg0: i32) -> (i32, i32) {
    %c0_i32 = arith.constant 0 : i32
    %c0_i32_0 = arith.constant 0 : i32
    %c0_i32_1 = arith.constant 0 : i32
    return %c0_i32, %c0_i32_0 : i32, i32
  }
  func.func @transform_6(%arg0: i32) -> (i32, i32) {
    %c0_i32 = arith.constant 0 : i32
    %c0_i32_0 = arith.constant 0 : i32
    %c0_i32_1 = arith.constant 0 : i32
    return %c0_i32, %c0_i32_0 : i32, i32
  }
  func.func @transform_7(%arg0: i32) -> (i32, i32) {
    %c0_i32 = arith.constant 0 : i32
    %c0_i32_0 = arith.constant 0 : i32
    %c0_i32_1 = arith.constant 0 : i32
    return %c0_i32, %c0_i32_0 : i32, i32
  }
  func.func @transform_8(%arg0: i32) -> (i32, i32) {
    %c0_i32 = arith.constant 0 : i32
    %c0_i32_0 = arith.constant 0 : i32
    %c0_i32_1 = arith.constant 0 : i32
    return %c0_i32, %c0_i32_0 : i32, i32
  }
  func.func @transform_9(%arg0: i32) -> (i32, i32) {
    %c0_i32 = arith.constant 0 : i32
    %c0_i32_0 = arith.constant 0 : i32
    %c0_i32_1 = arith.constant 0 : i32
    return %c0_i32, %c0_i32_0 : i32, i32
  }
  func.func @transform_10(%arg0: i32) -> (i32, i32) {
    %c0_i32 = arith.constant 0 : i32
    %c0_i32_0 = arith.constant 0 : i32
    %c0_i32_1 = arith.constant 0 : i32
    return %c0_i32, %c0_i32_0 : i32, i32
  }
  func.func @transform_11(%arg0: i32) -> (i32, i32) {
    %c0_i32 = arith.constant 0 : i32
    %c0_i32_0 = arith.constant 0 : i32
    %c0_i32_1 = arith.constant 0 : i32
    return %c0_i32, %c0_i32_0 : i32, i32
  }
  func.func @transform_12(%arg0: i32) -> (i32, i32) {
    %c0_i32 = arith.constant 0 : i32
    %c0_i32_0 = arith.constant 0 : i32
    %c0_i32_1 = arith.constant 0 : i32
    return %c0_i32, %c0_i32_0 : i32, i32
  }
  func.func @transform_13(%arg0: i32) -> (i32, i32, i32) {
    %c0_i32 = arith.constant 0 : i32
    %c0_i32_0 = arith.constant 0 : i32
    %c0_i32_1 = arith.constant 0 : i32
    return %arg0, %c0_i32, %c0_i32_0 : i32, i32, i32
  }
}

module attributes {stable_mosaic.version = 11 : i64} {
  func.func @block_kernel(%arg0: i32, %arg1: memref<1x8x32xf32, #tpu.memory_space<vmem>>, %arg2: memref<1x32xf32, #tpu.memory_space<vmem>>, %arg3: memref<1x32xf32, #tpu.memory_space<vmem>>, %arg4: memref<32x96xbf16, #tpu.memory_space<vmem>>, %arg5: memref<1x96xf32, #tpu.memory_space<vmem>>, %arg6: memref<32x32xbf16, #tpu.memory_space<vmem>>, %arg7: memref<1x32xf32, #tpu.memory_space<vmem>>, %arg8: memref<1x32xf32, #tpu.memory_space<vmem>>, %arg9: memref<1x32xf32, #tpu.memory_space<vmem>>, %arg10: memref<32x128xbf16, #tpu.memory_space<vmem>>, %arg11: memref<1x128xf32, #tpu.memory_space<vmem>>, %arg12: memref<128x32xbf16, #tpu.memory_space<vmem>>, %arg13: memref<1x32xf32, #tpu.memory_space<vmem>>, %arg14: memref<1x8x32xf32, #tpu.memory_space<vmem>>, %arg15: memref<8x32xbf16, #tpu.memory_space<vmem>>) attributes {dimension_semantics = [#tpu.dimension_semantics<parallel>], iteration_bounds = array<i64: 2>, scalar_prefetch = 0 : i64, scratch_operands = 1 : i64, tpu.core_type = #tpu.core_type<tc>, window_params = [{transform_indices = @transform_0, window_bounds = array<i64: 1, 8, 32>}, {pipeline_mode = #tpu.pipeline_mode<synchronous>, transform_indices = @transform_1, window_bounds = array<i64: 1, 32>}, {pipeline_mode = #tpu.pipeline_mode<synchronous>, transform_indices = @transform_2, window_bounds = array<i64: 1, 32>}, {pipeline_mode = #tpu.pipeline_mode<synchronous>, transform_indices = @transform_3, window_bounds = array<i64: 32, 96>}, {pipeline_mode = #tpu.pipeline_mode<synchronous>, transform_indices = @transform_4, window_bounds = array<i64: 1, 96>}, {pipeline_mode = #tpu.pipeline_mode<synchronous>, transform_indices = @transform_5, window_bounds = array<i64: 32, 32>}, {pipeline_mode = #tpu.pipeline_mode<synchronous>, transform_indices = @transform_6, window_bounds = array<i64: 1, 32>}, {pipeline_mode = #tpu.pipeline_mode<synchronous>, transform_indices = @transform_7, window_bounds = array<i64: 1, 32>}, {pipeline_mode = #tpu.pipeline_mode<synchronous>, transform_indices = @transform_8, window_bounds = array<i64: 1, 32>}, {pipeline_mode = #tpu.pipeline_mode<synchronous>, transform_indices = @transform_9, window_bounds = array<i64: 32, 128>}, {pipeline_mode = #tpu.pipeline_mode<synchronous>, transform_indices = @transform_10, window_bounds = array<i64: 1, 128>}, {pipeline_mode = #tpu.pipeline_mode<synchronous>, transform_indices = @transform_11, window_bounds = array<i64: 128, 32>}, {pipeline_mode = #tpu.pipeline_mode<synchronous>, transform_indices = @transform_12, window_bounds = array<i64: 1, 32>}, {transform_indices = @transform_13, window_bounds = array<i64: 1, 8, 32>}]} {
    %c0 = arith.constant 0 : index
    %c0_0 = arith.constant 0 : index
    %c0_1 = arith.constant 0 : index
    %0 = vector.load %arg1[%c0, %c0_0, %c0_1] : memref<1x8x32xf32, #tpu.memory_space<vmem>>, vector<1x8x32xf32>
    %1 = vector.shape_cast %0 : vector<1x8x32xf32> to vector<8x32xf32>
    %c0_2 = arith.constant 0 : index
    %c0_3 = arith.constant 0 : index
    %2 = vector.load %arg2[%c0_2, %c0_3] : memref<1x32xf32, #tpu.memory_space<vmem>>, vector<1x32xf32>
    %3 = vector.shape_cast %2 : vector<1x32xf32> to vector<32xf32>
    %c0_4 = arith.constant 0 : index
    %c0_5 = arith.constant 0 : index
    %4 = vector.load %arg3[%c0_4, %c0_5] : memref<1x32xf32, #tpu.memory_space<vmem>>, vector<1x32xf32>
    %5 = vector.shape_cast %4 : vector<1x32xf32> to vector<32xf32>
    %cst = arith.constant dense<0.000000e+00> : vector<8xf32>
    %6 = vector.multi_reduction <add>, %1, %cst [1] : vector<8x32xf32> to vector<8xf32>
    %7 = vector.shape_cast %6 : vector<8xf32> to vector<8x1xf32>
    %cst_6 = arith.constant 3.200000e+01 : f32
    %8 = vector.broadcast %cst_6 : f32 to vector<8x1xf32>
    %9 = arith.divf %7, %8 : vector<8x1xf32>
    %10 = vector.broadcast %9 : vector<8x1xf32> to vector<8x32xf32>
    %11 = arith.subf %1, %10 : vector<8x32xf32>
    %12 = arith.mulf %11, %11 : vector<8x32xf32>
    %cst_7 = arith.constant dense<0.000000e+00> : vector<8xf32>
    %13 = vector.multi_reduction <add>, %12, %cst_7 [1] : vector<8x32xf32> to vector<8xf32>
    %14 = vector.shape_cast %13 : vector<8xf32> to vector<8x1xf32>
    %cst_8 = arith.constant 3.200000e+01 : f32
    %15 = vector.broadcast %cst_8 : f32 to vector<8x1xf32>
    %16 = arith.divf %14, %15 : vector<8x1xf32>
    %17 = vector.broadcast %9 : vector<8x1xf32> to vector<8x32xf32>
    %18 = arith.subf %1, %17 : vector<8x32xf32>
    %cst_9 = arith.constant 9.99999997E-7 : f32
    %19 = vector.broadcast %cst_9 : f32 to vector<8x1xf32>
    %20 = arith.addf %16, %19 : vector<8x1xf32>
    %21 = math.rsqrt %20 : vector<8x1xf32>
    %22 = vector.broadcast %21 : vector<8x1xf32> to vector<8x32xf32>
    %23 = arith.mulf %18, %22 : vector<8x32xf32>
    %24 = vector.shape_cast %3 : vector<32xf32> to vector<1x32xf32>
    %25 = vector.broadcast %24 : vector<1x32xf32> to vector<8x32xf32>
    %26 = arith.mulf %23, %25 : vector<8x32xf32>
    %27 = vector.shape_cast %5 : vector<32xf32> to vector<1x32xf32>
    %28 = vector.broadcast %27 : vector<1x32xf32> to vector<8x32xf32>
    %29 = arith.addf %26, %28 : vector<8x32xf32>
    %30 = arith.truncf %29 : vector<8x32xf32> to vector<8x32xbf16>
    %c0_10 = arith.constant 0 : index
    %c0_11 = arith.constant 0 : index
    %31 = vector.load %arg4[%c0_10, %c0_11] : memref<32x96xbf16, #tpu.memory_space<vmem>>, vector<32x96xbf16>
    %cst_12 = arith.constant dense<0.000000e+00> : vector<8x96xf32>
    %32 = tpu.matmul %30, %31, %cst_12 {dimension_numbers = #tpu.dot_dimension_numbers<[1], [0], [0], [1], [0, 0, 1, 1], [], []>} : vector<8x32xbf16>, vector<32x96xbf16>, vector<8x96xf32> -> vector<8x96xf32>
    %c0_13 = arith.constant 0 : index
    %c0_14 = arith.constant 0 : index
    %33 = vector.load %arg5[%c0_13, %c0_14] : memref<1x96xf32, #tpu.memory_space<vmem>>, vector<1x96xf32>
    %34 = vector.shape_cast %33 : vector<1x96xf32> to vector<96xf32>
    %35 = vector.shape_cast %34 : vector<96xf32> to vector<1x96xf32>
    %36 = vector.broadcast %35 : vector<1x96xf32> to vector<8x96xf32>
    %37 = arith.addf %32, %36 : vector<8x96xf32>
    %38 = tpu.iota {dimensions = array<i32: 1>} : vector<1x96xi32>
    %c32_i32 = arith.constant 32 : i32
    %39 = vector.broadcast %c32_i32 : i32 to vector<1x96xi32>
    %40 = arith.cmpi slt, %38, %39 : vector<1x96xi32>
    %cst_15 = arith.constant 0.353553385 : f32
    %cst_16 = arith.constant 1.000000e+00 : f32
    %41 = vector.broadcast %cst_15 : f32 to vector<1x96xf32>
    %42 = vector.broadcast %cst_16 : f32 to vector<1x96xf32>
    %43 = arith.select %40, %41, %42 : vector<1x96xi1>, vector<1x96xf32>
    %44 = vector.broadcast %43 : vector<1x96xf32> to vector<8x96xf32>
    %45 = arith.mulf %37, %44 : vector<8x96xf32>
    %46 = arith.truncf %45 : vector<8x96xf32> to vector<8x96xbf16>
    %47 = vector.extract_strided_slice %46 {offsets = [0, 0], sizes = [8, 8], strides = [1, 1]} : vector<8x96xbf16> to vector<8x8xbf16>
    %48 = vector.extract_strided_slice %46 {offsets = [0, 32], sizes = [8, 8], strides = [1, 1]} : vector<8x96xbf16> to vector<8x8xbf16>
    %49 = vector.extract_strided_slice %46 {offsets = [0, 64], sizes = [8, 8], strides = [1, 1]} : vector<8x96xbf16> to vector<8x8xbf16>
    %cst_17 = arith.constant dense<0.000000e+00> : vector<8x8xf32>
    %50 = tpu.matmul %47, %48, %cst_17 {dimension_numbers = #tpu.dot_dimension_numbers<[1], [1], [0], [0], [0, 0, 1, 0], [], []>} : vector<8x8xbf16>, vector<8x8xbf16>, vector<8x8xf32> -> vector<8x8xf32>
    %cst_18 = arith.constant dense<0xFF800000> : vector<8xf32>
    %51 = vector.multi_reduction <maximumf>, %50, %cst_18 [1] : vector<8x8xf32> to vector<8xf32>
    %52 = vector.shape_cast %51 : vector<8xf32> to vector<8x1xf32>
    %53 = vector.broadcast %52 : vector<8x1xf32> to vector<8x8xf32>
    %54 = arith.subf %50, %53 : vector<8x8xf32>
    %55 = math.exp %54 : vector<8x8xf32>
    %cst_19 = arith.constant dense<0.000000e+00> : vector<8xf32>
    %56 = vector.multi_reduction <add>, %55, %cst_19 [1] : vector<8x8xf32> to vector<8xf32>
    %57 = vector.shape_cast %56 : vector<8xf32> to vector<8x1xf32>
    %58 = tpu.reciprocal %57 {approx = true} : vector<8x1xf32> -> vector<8x1xf32>
    %59 = vector.broadcast %58 : vector<8x1xf32> to vector<8x8xf32>
    %60 = arith.mulf %55, %59 : vector<8x8xf32>
    %61 = arith.truncf %60 : vector<8x8xf32> to vector<8x8xbf16>
    %cst_20 = arith.constant dense<0.000000e+00> : vector<8x8xf32>
    %62 = tpu.matmul %61, %49, %cst_20 {dimension_numbers = #tpu.dot_dimension_numbers<[1], [0], [0], [1], [0, 0, 1, 1], [], []>} : vector<8x8xbf16>, vector<8x8xbf16>, vector<8x8xf32> -> vector<8x8xf32>
    %63 = arith.truncf %62 : vector<8x8xf32> to vector<8x8xbf16>
    %c0_21 = arith.constant 0 : index
    %c0_22 = arith.constant 0 : index
    %64 = vector.load %arg15[%c0_21, %c0_22] : memref<8x32xbf16, #tpu.memory_space<vmem>>, vector<8x8xbf16>
    tpu.vector_store %arg15[%c0_21, %c0_22], %63 {strides = array<i32>} : memref<8x32xbf16, #tpu.memory_space<vmem>>, vector<8x8xbf16>,
    %65 = vector.extract_strided_slice %46 {offsets = [0, 8], sizes = [8, 8], strides = [1, 1]} : vector<8x96xbf16> to vector<8x8xbf16>
    %66 = vector.extract_strided_slice %46 {offsets = [0, 40], sizes = [8, 8], strides = [1, 1]} : vector<8x96xbf16> to vector<8x8xbf16>
    %67 = vector.extract_strided_slice %46 {offsets = [0, 72], sizes = [8, 8], strides = [1, 1]} : vector<8x96xbf16> to vector<8x8xbf16>
    %cst_23 = arith.constant dense<0.000000e+00> : vector<8x8xf32>
    %68 = tpu.matmul %65, %66, %cst_23 {dimension_numbers = #tpu.dot_dimension_numbers<[1], [1], [0], [0], [0, 0, 1, 0], [], []>} : vector<8x8xbf16>, vector<8x8xbf16>, vector<8x8xf32> -> vector<8x8xf32>
    %cst_24 = arith.constant dense<0xFF800000> : vector<8xf32>
    %69 = vector.multi_reduction <maximumf>, %68, %cst_24 [1] : vector<8x8xf32> to vector<8xf32>
    %70 = vector.shape_cast %69 : vector<8xf32> to vector<8x1xf32>
    %71 = vector.broadcast %70 : vector<8x1xf32> to vector<8x8xf32>
    %72 = arith.subf %68, %71 : vector<8x8xf32>
    %73 = math.exp %72 : vector<8x8xf32>
    %cst_25 = arith.constant dense<0.000000e+00> : vector<8xf32>
    %74 = vector.multi_reduction <add>, %73, %cst_25 [1] : vector<8x8xf32> to vector<8xf32>
    %75 = vector.shape_cast %74 : vector<8xf32> to vector<8x1xf32>
    %76 = tpu.reciprocal %75 {approx = true} : vector<8x1xf32> -> vector<8x1xf32>
    %77 = vector.broadcast %76 : vector<8x1xf32> to vector<8x8xf32>
    %78 = arith.mulf %73, %77 : vector<8x8xf32>
    %79 = arith.truncf %78 : vector<8x8xf32> to vector<8x8xbf16>
    %cst_26 = arith.constant dense<0.000000e+00> : vector<8x8xf32>
    %80 = tpu.matmul %79, %67, %cst_26 {dimension_numbers = #tpu.dot_dimension_numbers<[1], [0], [0], [1], [0, 0, 1, 1], [], []>} : vector<8x8xbf16>, vector<8x8xbf16>, vector<8x8xf32> -> vector<8x8xf32>
    %81 = arith.truncf %80 : vector<8x8xf32> to vector<8x8xbf16>
    %c0_27 = arith.constant 0 : index
    %c8 = arith.constant 8 : index
    %82 = vector.load %arg15[%c0_27, %c8] : memref<8x32xbf16, #tpu.memory_space<vmem>>, vector<8x8xbf16>
    tpu.vector_store %arg15[%c0_27, %c8], %81 {strides = array<i32>} : memref<8x32xbf16, #tpu.memory_space<vmem>>, vector<8x8xbf16>,
    %83 = vector.extract_strided_slice %46 {offsets = [0, 16], sizes = [8, 8], strides = [1, 1]} : vector<8x96xbf16> to vector<8x8xbf16>
    %84 = vector.extract_strided_slice %46 {offsets = [0, 48], sizes = [8, 8], strides = [1, 1]} : vector<8x96xbf16> to vector<8x8xbf16>
    %85 = vector.extract_strided_slice %46 {offsets = [0, 80], sizes = [8, 8], strides = [1, 1]} : vector<8x96xbf16> to vector<8x8xbf16>
    %cst_28 = arith.constant dense<0.000000e+00> : vector<8x8xf32>
    %86 = tpu.matmul %83, %84, %cst_28 {dimension_numbers = #tpu.dot_dimension_numbers<[1], [1], [0], [0], [0, 0, 1, 0], [], []>} : vector<8x8xbf16>, vector<8x8xbf16>, vector<8x8xf32> -> vector<8x8xf32>
    %cst_29 = arith.constant dense<0xFF800000> : vector<8xf32>
    %87 = vector.multi_reduction <maximumf>, %86, %cst_29 [1] : vector<8x8xf32> to vector<8xf32>
    %88 = vector.shape_cast %87 : vector<8xf32> to vector<8x1xf32>
    %89 = vector.broadcast %88 : vector<8x1xf32> to vector<8x8xf32>
    %90 = arith.subf %86, %89 : vector<8x8xf32>
    %91 = math.exp %90 : vector<8x8xf32>
    %cst_30 = arith.constant dense<0.000000e+00> : vector<8xf32>
    %92 = vector.multi_reduction <add>, %91, %cst_30 [1] : vector<8x8xf32> to vector<8xf32>
    %93 = vector.shape_cast %92 : vector<8xf32> to vector<8x1xf32>
    %94 = tpu.reciprocal %93 {approx = true} : vector<8x1xf32> -> vector<8x1xf32>
    %95 = vector.broadcast %94 : vector<8x1xf32> to vector<8x8xf32>
    %96 = arith.mulf %91, %95 : vector<8x8xf32>
    %97 = arith.truncf %96 : vector<8x8xf32> to vector<8x8xbf16>
    %cst_31 = arith.constant dense<0.000000e+00> : vector<8x8xf32>
    %98 = tpu.matmul %97, %85, %cst_31 {dimension_numbers = #tpu.dot_dimension_numbers<[1], [0], [0], [1], [0, 0, 1, 1], [], []>} : vector<8x8xbf16>, vector<8x8xbf16>, vector<8x8xf32> -> vector<8x8xf32>
    %99 = arith.truncf %98 : vector<8x8xf32> to vector<8x8xbf16>
    %c0_32 = arith.constant 0 : index
    %c16 = arith.constant 16 : index
    %100 = vector.load %arg15[%c0_32, %c16] : memref<8x32xbf16, #tpu.memory_space<vmem>>, vector<8x8xbf16>
    tpu.vector_store %arg15[%c0_32, %c16], %99 {strides = array<i32>} : memref<8x32xbf16, #tpu.memory_space<vmem>>, vector<8x8xbf16>,
    %101 = vector.extract_strided_slice %46 {offsets = [0, 24], sizes = [8, 8], strides = [1, 1]} : vector<8x96xbf16> to vector<8x8xbf16>
    %102 = vector.extract_strided_slice %46 {offsets = [0, 56], sizes = [8, 8], strides = [1, 1]} : vector<8x96xbf16> to vector<8x8xbf16>
    %103 = vector.extract_strided_slice %46 {offsets = [0, 88], sizes = [8, 8], strides = [1, 1]} : vector<8x96xbf16> to vector<8x8xbf16>
    %cst_33 = arith.constant dense<0.000000e+00> : vector<8x8xf32>
    %104 = tpu.matmul %101, %102, %cst_33 {dimension_numbers = #tpu.dot_dimension_numbers<[1], [1], [0], [0], [0, 0, 1, 0], [], []>} : vector<8x8xbf16>, vector<8x8xbf16>, vector<8x8xf32> -> vector<8x8xf32>
    %cst_34 = arith.constant dense<0xFF800000> : vector<8xf32>
    %105 = vector.multi_reduction <maximumf>, %104, %cst_34 [1] : vector<8x8xf32> to vector<8xf32>
    %106 = vector.shape_cast %105 : vector<8xf32> to vector<8x1xf32>
    %107 = vector.broadcast %106 : vector<8x1xf32> to vector<8x8xf32>
    %108 = arith.subf %104, %107 : vector<8x8xf32>
    %109 = math.exp %108 : vector<8x8xf32>
    %cst_35 = arith.constant dense<0.000000e+00> : vector<8xf32>
    %110 = vector.multi_reduction <add>, %109, %cst_35 [1] : vector<8x8xf32> to vector<8xf32>
    %111 = vector.shape_cast %110 : vector<8xf32> to vector<8x1xf32>
    %112 = tpu.reciprocal %111 {approx = true} : vector<8x1xf32> -> vector<8x1xf32>
    %113 = vector.broadcast %112 : vector<8x1xf32> to vector<8x8xf32>
    %114 = arith.mulf %109, %113 : vector<8x8xf32>
    %115 = arith.truncf %114 : vector<8x8xf32> to vector<8x8xbf16>
    %cst_36 = arith.constant dense<0.000000e+00> : vector<8x8xf32>
    %116 = tpu.matmul %115, %103, %cst_36 {dimension_numbers = #tpu.dot_dimension_numbers<[1], [0], [0], [1], [0, 0, 1, 1], [], []>} : vector<8x8xbf16>, vector<8x8xbf16>, vector<8x8xf32> -> vector<8x8xf32>
    %117 = arith.truncf %116 : vector<8x8xf32> to vector<8x8xbf16>
    %c0_37 = arith.constant 0 : index
    %c24 = arith.constant 24 : index
    %118 = vector.load %arg15[%c0_37, %c24] : memref<8x32xbf16, #tpu.memory_space<vmem>>, vector<8x8xbf16>
    tpu.vector_store %arg15[%c0_37, %c24], %117 {strides = array<i32>} : memref<8x32xbf16, #tpu.memory_space<vmem>>, vector<8x8xbf16>,
    %c0_38 = arith.constant 0 : index
    %c0_39 = arith.constant 0 : index
    %119 = vector.load %arg15[%c0_38, %c0_39] : memref<8x32xbf16, #tpu.memory_space<vmem>>, vector<8x32xbf16>
    %c0_40 = arith.constant 0 : index
    %c0_41 = arith.constant 0 : index
    %120 = vector.load %arg6[%c0_40, %c0_41] : memref<32x32xbf16, #tpu.memory_space<vmem>>, vector<32x32xbf16>
    %cst_42 = arith.constant dense<0.000000e+00> : vector<8x32xf32>
    %121 = tpu.matmul %119, %120, %cst_42 {dimension_numbers = #tpu.dot_dimension_numbers<[1], [0], [0], [1], [0, 0, 1, 1], [], []>} : vector<8x32xbf16>, vector<32x32xbf16>, vector<8x32xf32> -> vector<8x32xf32>
    %122 = arith.addf %1, %121 : vector<8x32xf32>
    %c0_43 = arith.constant 0 : index
    %c0_44 = arith.constant 0 : index
    %123 = vector.load %arg7[%c0_43, %c0_44] : memref<1x32xf32, #tpu.memory_space<vmem>>, vector<1x32xf32>
    %124 = vector.shape_cast %123 : vector<1x32xf32> to vector<32xf32>
    %125 = vector.shape_cast %124 : vector<32xf32> to vector<1x32xf32>
    %126 = vector.broadcast %125 : vector<1x32xf32> to vector<8x32xf32>
    %127 = arith.addf %122, %126 : vector<8x32xf32>
    %c0_45 = arith.constant 0 : index
    %c0_46 = arith.constant 0 : index
    %128 = vector.load %arg8[%c0_45, %c0_46] : memref<1x32xf32, #tpu.memory_space<vmem>>, vector<1x32xf32>
    %129 = vector.shape_cast %128 : vector<1x32xf32> to vector<32xf32>
    %c0_47 = arith.constant 0 : index
    %c0_48 = arith.constant 0 : index
    %130 = vector.load %arg9[%c0_47, %c0_48] : memref<1x32xf32, #tpu.memory_space<vmem>>, vector<1x32xf32>
    %131 = vector.shape_cast %130 : vector<1x32xf32> to vector<32xf32>
    %cst_49 = arith.constant dense<0.000000e+00> : vector<8xf32>
    %132 = vector.multi_reduction <add>, %127, %cst_49 [1] : vector<8x32xf32> to vector<8xf32>
    %133 = vector.shape_cast %132 : vector<8xf32> to vector<8x1xf32>
    %cst_50 = arith.constant 3.200000e+01 : f32
    %134 = vector.broadcast %cst_50 : f32 to vector<8x1xf32>
    %135 = arith.divf %133, %134 : vector<8x1xf32>
    %136 = vector.broadcast %135 : vector<8x1xf32> to vector<8x32xf32>
    %137 = arith.subf %127, %136 : vector<8x32xf32>
    %138 = arith.mulf %137, %137 : vector<8x32xf32>
    %cst_51 = arith.constant dense<0.000000e+00> : vector<8xf32>
    %139 = vector.multi_reduction <add>, %138, %cst_51 [1] : vector<8x32xf32> to vector<8xf32>
    %140 = vector.shape_cast %139 : vector<8xf32> to vector<8x1xf32>
    %cst_52 = arith.constant 3.200000e+01 : f32
    %141 = vector.broadcast %cst_52 : f32 to vector<8x1xf32>
    %142 = arith.divf %140, %141 : vector<8x1xf32>
    %143 = vector.broadcast %135 : vector<8x1xf32> to vector<8x32xf32>
    %144 = arith.subf %127, %143 : vector<8x32xf32>
    %cst_53 = arith.constant 9.99999997E-7 : f32
    %145 = vector.broadcast %cst_53 : f32 to vector<8x1xf32>
    %146 = arith.addf %142, %145 : vector<8x1xf32>
    %147 = math.rsqrt %146 : vector<8x1xf32>
    %148 = vector.broadcast %147 : vector<8x1xf32> to vector<8x32xf32>
    %149 = arith.mulf %144, %148 : vector<8x32xf32>
    %150 = vector.shape_cast %129 : vector<32xf32> to vector<1x32xf32>
    %151 = vector.broadcast %150 : vector<1x32xf32> to vector<8x32xf32>
    %152 = arith.mulf %149, %151 : vector<8x32xf32>
    %153 = vector.shape_cast %131 : vector<32xf32> to vector<1x32xf32>
    %154 = vector.broadcast %153 : vector<1x32xf32> to vector<8x32xf32>
    %155 = arith.addf %152, %154 : vector<8x32xf32>
    %156 = arith.truncf %155 : vector<8x32xf32> to vector<8x32xbf16>
    %c0_54 = arith.constant 0 : index
    %c0_55 = arith.constant 0 : index
    %157 = vector.load %arg10[%c0_54, %c0_55] : memref<32x128xbf16, #tpu.memory_space<vmem>>, vector<32x128xbf16>
    %cst_56 = arith.constant dense<0.000000e+00> : vector<8x128xf32>
    %158 = tpu.matmul %156, %157, %cst_56 {dimension_numbers = #tpu.dot_dimension_numbers<[1], [0], [0], [1], [0, 0, 1, 1], [], []>} : vector<8x32xbf16>, vector<32x128xbf16>, vector<8x128xf32> -> vector<8x128xf32>
    %c0_57 = arith.constant 0 : index
    %c0_58 = arith.constant 0 : index
    %159 = vector.load %arg11[%c0_57, %c0_58] : memref<1x128xf32, #tpu.memory_space<vmem>>, vector<1x128xf32>
    %160 = vector.shape_cast %159 : vector<1x128xf32> to vector<128xf32>
    %161 = vector.shape_cast %160 : vector<128xf32> to vector<1x128xf32>
    %162 = vector.broadcast %161 : vector<1x128xf32> to vector<8x128xf32>
    %163 = arith.addf %158, %162 : vector<8x128xf32>
    %cst_59 = arith.constant 5.000000e-01 : f32
    %164 = vector.broadcast %cst_59 : f32 to vector<8x128xf32>
    %165 = arith.mulf %164, %163 : vector<8x128xf32>
    %cst_60 = arith.constant 0.707106769 : f32
    %166 = vector.broadcast %cst_60 : f32 to vector<8x128xf32>
    %167 = arith.mulf %163, %166 : vector<8x128xf32>
    %168 = math.erf %167 : vector<8x128xf32>
    %cst_61 = arith.constant 1.000000e+00 : f32
    %169 = vector.broadcast %cst_61 : f32 to vector<8x128xf32>
    %170 = arith.addf %169, %168 : vector<8x128xf32>
    %171 = arith.mulf %165, %170 : vector<8x128xf32>
    %172 = arith.truncf %171 : vector<8x128xf32> to vector<8x128xbf16>
    %c0_62 = arith.constant 0 : index
    %c0_63 = arith.constant 0 : index
    %173 = vector.load %arg12[%c0_62, %c0_63] : memref<128x32xbf16, #tpu.memory_space<vmem>>, vector<128x32xbf16>
    %cst_64 = arith.constant dense<0.000000e+00> : vector<8x32xf32>
    %174 = tpu.matmul %172, %173, %cst_64 {dimension_numbers = #tpu.dot_dimension_numbers<[1], [0], [0], [1], [0, 0, 1, 1], [], []>} : vector<8x128xbf16>, vector<128x32xbf16>, vector<8x32xf32> -> vector<8x32xf32>
    %c0_65 = arith.constant 0 : index
    %c0_66 = arith.constant 0 : index
    %175 = vector.load %arg13[%c0_65, %c0_66] : memref<1x32xf32, #tpu.memory_space<vmem>>, vector<1x32xf32>
    %176 = vector.shape_cast %175 : vector<1x32xf32> to vector<32xf32>
    %177 = vector.shape_cast %176 : vector<32xf32> to vector<1x32xf32>
    %178 = vector.broadcast %177 : vector<1x32xf32> to vector<8x32xf32>
    %179 = arith.addf %174, %178 : vector<8x32xf32>
    %180 = arith.addf %127, %179 : vector<8x32xf32>
    %c0_67 = arith.constant 0 : index
    %c0_68 = arith.constant 0 : index
    %c0_69 = arith.constant 0 : index
    %181 = vector.load %arg14[%c0_67, %c0_68, %c0_69] : memref<1x8x32xf32, #tpu.memory_space<vmem>>, vector<1x8x32xf32>
    %182 = vector.shape_cast %181 : vector<1x8x32xf32> to vector<8x32xf32>
    %183 = vector.shape_cast %180 : vector<8x32xf32> to vector<1x8x32xf32>
    tpu.vector_store %arg14[%c0_67, %c0_68, %c0_69], %183 {strides = array<i32>} : memref<1x8x32xf32, #tpu.memory_space<vmem>>, vector<1x8x32xf32>,
    return
  }
  func.func @transform_0(%arg0: i32) -> (i32, i32, i32) {
    %c0_i32 = arith.constant 0 : i32
    %c0_i32_0 = arith.constant 0 : i32
    %c0_i32_1 = arith.constant 0 : i32
    return %arg0, %c0_i32, %c0_i32_0 : i32, i32, i32
  }
  func.func @transform_1(%arg0: i32) -> (i32, i32) {
    %c0_i32 = arith.constant 0 : i32
    %c0_i32_0 = arith.constant 0 : i32
    %c0_i32_1 = arith.constant 0 : i32
    return %c0_i32, %c0_i32_0 : i32, i32
  }
  func.func @transform_2(%arg0: i32) -> (i32, i32) {
    %c0_i32 = arith.constant 0 : i32
    %c0_i32_0 = arith.constant 0 : i32
    %c0_i32_1 = arith.constant 0 : i32
    return %c0_i32, %c0_i32_0 : i32, i32
  }
  func.func @transform_3(%arg0: i32) -> (i32, i32) {
    %c0_i32 = arith.constant 0 : i32
    %c0_i32_0 = arith.constant 0 : i32
    %c0_i32_1 = arith.constant 0 : i32
    return %c0_i32, %c0_i32_0 : i32, i32
  }
  func.func @transform_4(%arg0: i32) -> (i32, i32) {
    %c0_i32 = arith.constant 0 : i32
    %c0_i32_0 = arith.constant 0 : i32
    %c0_i32_1 = arith.constant 0 : i32
    return %c0_i32, %c0_i32_0 : i32, i32
  }
  func.func @transform_5(%arg0: i32) -> (i32, i32) {
    %c0_i32 = arith.constant 0 : i32
    %c0_i32_0 = arith.constant 0 : i32
    %c0_i32_1 = arith.constant 0 : i32
    return %c0_i32, %c0_i32_0 : i32, i32
  }
  func.func @transform_6(%arg0: i32) -> (i32, i32) {
    %c0_i32 = arith.constant 0 : i32
    %c0_i32_0 = arith.constant 0 : i32
    %c0_i32_1 = arith.constant 0 : i32
    return %c0_i32, %c0_i32_0 : i32, i32
  }
  func.func @transform_7(%arg0: i32) -> (i32, i32) {
    %c0_i32 = arith.constant 0 : i32
    %c0_i32_0 = arith.constant 0 : i32
    %c0_i32_1 = arith.constant 0 : i32
    return %c0_i32, %c0_i32_0 : i32, i32
  }
  func.func @transform_8(%arg0: i32) -> (i32, i32) {
    %c0_i32 = arith.constant 0 : i32
    %c0_i32_0 = arith.constant 0 : i32
    %c0_i32_1 = arith.constant 0 : i32
    return %c0_i32, %c0_i32_0 : i32, i32
  }
  func.func @transform_9(%arg0: i32) -> (i32, i32) {
    %c0_i32 = arith.constant 0 : i32
    %c0_i32_0 = arith.constant 0 : i32
    %c0_i32_1 = arith.constant 0 : i32
    return %c0_i32, %c0_i32_0 : i32, i32
  }
  func.func @transform_10(%arg0: i32) -> (i32, i32) {
    %c0_i32 = arith.constant 0 : i32
    %c0_i32_0 = arith.constant 0 : i32
    %c0_i32_1 = arith.constant 0 : i32
    return %c0_i32, %c0_i32_0 : i32, i32
  }
  func.func @transform_11(%arg0: i32) -> (i32, i32) {
    %c0_i32 = arith.constant 0 : i32
    %c0_i32_0 = arith.constant 0 : i32
    %c0_i32_1 = arith.constant 0 : i32
    return %c0_i32, %c0_i32_0 : i32, i32
  }
  func.func @transform_12(%arg0: i32) -> (i32, i32) {
    %c0_i32 = arith.constant 0 : i32
    %c0_i32_0 = arith.constant 0 : i32
    %c0_i32_1 = arith.constant 0 : i32
    return %c0_i32, %c0_i32_0 : i32, i32
  }
  func.func @transform_13(%arg0: i32) -> (i32, i32, i32) {
    %c0_i32 = arith.constant 0 : i32
    %c0_i32_0 = arith.constant 0 : i32
    %c0_i32_1 = arith.constant 0 : i32
    return %arg0, %c0_i32, %c0_i32_0 : i32, i32, i32
  }
}

</mosaic_0001>

<llo_original>
// kernel: tpu_custom_call.1
$region0: #{tpu_custom_call.1}
  #allocation0 [shape = 'u32[]', space=smem, size = 0x4, offset = 0x4, fixed_abs, tag = 'smem constant byte address 0x4 - core index']
  #allocation1 [shape = 'u32[72,128]{1,0:T(1,128)}', space=vmem, size = 0x9000, scoped, tag = 'internal scratch']
  #allocation2 [shape = 'bf16[8,32]{1,0:T(8,128)(2,1)}', space=vmem, size = 0x800, scoped, tag = 'scratch operand']
  %s0 = inlined_call_operand.vmem [shape: f32[2,8,32], index: 0, kind: input, shape index: {}]
  %s1 = inlined_call_operand.vmem [shape: f32[1,32], index: 1, kind: input, shape index: {}]
  %s2 = inlined_call_operand.vmem [shape: f32[1,32], index: 2, kind: input, shape index: {}]
  %s3 = inlined_call_operand.vmem [shape: bf16[32,96], index: 3, kind: input, shape index: {}]
  %s4 = inlined_call_operand.vmem [shape: f32[1,96], index: 4, kind: input, shape index: {}]
  %s5 = inlined_call_operand.vmem [shape: bf16[32,32], index: 5, kind: input, shape index: {}]
  %s6 = inlined_call_operand.vmem [shape: f32[1,32], index: 6, kind: input, shape index: {}]
  %s7 = inlined_call_operand.vmem [shape: f32[1,32], index: 7, kind: input, shape index: {}]
  %s8 = inlined_call_operand.vmem [shape: f32[1,32], index: 8, kind: input, shape index: {}]
  %s9 = inlined_call_operand.vmem [shape: bf16[32,128], index: 9, kind: input, shape index: {}]
  %s10 = inlined_call_operand.vmem [shape: f32[1,128], index: 10, kind: input, shape index: {}]
  %s11 = inlined_call_operand.vmem [shape: bf16[128,32], index: 11, kind: input, shape index: {}]
  %s12 = inlined_call_operand.vmem [shape: f32[1,32], index: 12, kind: input, shape index: {}]
  %s13 = inlined_call_operand.hbm [shape: f32[2,8,32], index: 13, kind: output, shape index: {}]
  %s14 = sld [smem:[#allocation0]]
  $region85: #{tpu_custom_call.1} parent=0
    _
  %s16 = ssub.s32 1, %s14
  %s17 = scalar_select 0, %s16, %s14
  $region1: #{tpu_custom_call.1} parent=0
    #allocation3 [shape = 'u8[8192]{0}', space=vmem, size = 0x2000, scoped, tag = 'output window, operand 0']
    #allocation4 [shape = 's32[2]{0}', space=sflag, size = 0x8, scoped, tag = 'scoped memory for tpu_custom_call.1']
    %18 = vsyncpa [#allocation4], 0
    %s19 = scalar_lea.sflag [#allocation4], 1
    %20 = vsyncpa %s19, 0
    loop: start=0, step=1, limit=4
    $region2: #{tpu_custom_call.1} parent=1 // loop_pre_header
      _
    $region3: #{tpu_custom_call.1} parent=1 // loop_header
      %s22 = sphi 0, %s26
      %p23 = scmp.ge.s32.totalorder %s22, 4
      %s32 = sphi 0, %s34
      %s35 = sphi 0, %s32
      %s36 = sphi 0, %s35
      %s52 = sphi 0, %s36
      %s56 = sphi 0, %s56
      %s58 = sphi 0, %s56
      %s59 = sphi 0, %s58
      %s73 = sphi 0, %s59
      %s77 = sphi 0, %s77
      %s79 = sphi 0, %s77
      %s80 = sphi 0, %s79
      %s94 = sphi 0, %s80
      %s98 = sphi 0, %s98
      %s100 = sphi 0, %s98
      %s101 = sphi 0, %s100
      %s115 = sphi 0, %s101
      %s119 = sphi 0, %s119
      %s121 = sphi 0, %s119
      %s122 = sphi 0, %s121
      %s136 = sphi 0, %s122
      %s140 = sphi 0, %s140
      %s142 = sphi 0, %s140
      %s143 = sphi 0, %s142
      %s157 = sphi 0, %s143
      %s161 = sphi 0, %s161
      %s163 = sphi 0, %s161
      %s164 = sphi 0, %s163
      %s178 = sphi 0, %s164
      %s182 = sphi 0, %s182
      %s184 = sphi 0, %s182
      %s185 = sphi 0, %s184
      %s199 = sphi 0, %s185
      %s203 = sphi 0, %s203
      %s205 = sphi 0, %s203
      %s206 = sphi 0, %s205
      %s220 = sphi 0, %s206
      %s224 = sphi 0, %s224
      %s226 = sphi 0, %s224
      %s227 = sphi 0, %s226
      %s241 = sphi 0, %s227
      %s245 = sphi 0, %s245
      %s247 = sphi 0, %s245
      %s248 = sphi 0, %s247
      %s262 = sphi 0, %s248
      %s266 = sphi 0, %s266
      %s268 = sphi 0, %s266
      %s269 = sphi 0, %s268
      %s283 = sphi 0, %s269
      %s287 = sphi 0, %s287
      %s289 = sphi 0, %s287
      %s290 = sphi 0, %s289
      %s304 = sphi 0, %s290
      %s310 = sphi 0, %s312
      %s313 = sphi 0, %s310
      %s314 = sphi 0, %s313
      %s330 = sphi 0, %s314
    $region4: #{tpu_custom_call.1} parent=1 // loop_header_branch
      %25 = sbr.rel (%p23) target = $region8
    $region5: #{tpu_custom_call.1} parent=1 // loop_body
      %s27 = ssub.s32 %s22, 1
      %s28 = ssub.s32 %s22, 2
      %s29 = sadd.s32 %s22, 1
      %s30 = ssub.s32 %s22, %s29
      %p31 = scmp.eq.s32.totalorder %s30, 0
      %s33 = sadd.s32 %s32, 1
      %s34 = scalar_select %p31, %s32, %s33
      %p37 = pneg %p31
      %p38 = scmp.eq.s32.totalorder %s22, 1
      %p39 = por %p37, %p38
      %p40 = scmp.ne.s32.totalorder %s32, %s35
      %p41 = scmp.eq.s32.totalorder %s22, 0
      %p42 = por %p40, %p41
      %p43 = scmp.ne.s32.totalorder %s32, %s35
      %p44 = scmp.eq.s32.totalorder %s27, 1
      %p45 = por %p43, %p44
      %p46 = scmp.ne.s32.totalorder %s35, %s36
      %p47 = scmp.eq.s32.totalorder %s27, 0
      %p48 = por %p46, %p47
      %p49 = scmp.ne.s32.totalorder %s35, %s36
      %p50 = scmp.eq.s32.totalorder %s28, 1
      %p51 = por %p49, %p50
      %p53 = scmp.ne.s32.totalorder %s36, %s52
      %p54 = scmp.eq.s32.totalorder %s28, 0
      %p55 = por %p53, %p54
      %s57 = sadd.s32 %s56, 1
      %p60 = scmp.eq.s32.totalorder %s22, 1
      %p61 = scmp.ne.s32.totalorder %s56, %s58
      %p62 = scmp.eq.s32.totalorder %s22, 0
      %p63 = por %p61, %p62
      %p64 = scmp.ne.s32.totalorder %s56, %s58
      %p65 = scmp.eq.s32.totalorder %s27, 1
      %p66 = por %p64, %p65
      %p67 = scmp.ne.s32.totalorder %s58, %s59
      %p68 = scmp.eq.s32.totalorder %s27, 0
      %p69 = por %p67, %p68
      %p70 = scmp.ne.s32.totalorder %s58, %s59
      %p71 = scmp.eq.s32.totalorder %s28, 1
      %p72 = por %p70, %p71
      %p74 = scmp.ne.s32.totalorder %s59, %s73
      %p75 = scmp.eq.s32.totalorder %s28, 0
      %p76 = por %p74, %p75
      %s78 = sadd.s32 %s77, 1
      %p81 = scmp.eq.s32.totalorder %s22, 1
      %p82 = scmp.ne.s32.totalorder %s77, %s79
      %p83 = scmp.eq.s32.totalorder %s22, 0
      %p84 = por %p82, %p83
      %p85 = scmp.ne.s32.totalorder %s77, %s79
      %p86 = scmp.eq.s32.totalorder %s27, 1
      %p87 = por %p85, %p86
      %p88 = scmp.ne.s32.totalorder %s79, %s80
      %p89 = scmp.eq.s32.totalorder %s27, 0
      %p90 = por %p88, %p89
      %p91 = scmp.ne.s32.totalorder %s79, %s80
      %p92 = scmp.eq.s32.totalorder %s28, 1
      %p93 = por %p91, %p92
      %p95 = scmp.ne.s32.totalorder %s80, %s94
      %p96 = scmp.eq.s32.totalorder %s28, 0
      %p97 = por %p95, %p96
      %s99 = sadd.s32 %s98, 1
      %p102 = scmp.eq.s32.totalorder %s22, 1
      %p103 = scmp.ne.s32.totalorder %s98, %s100
      %p104 = scmp.eq.s32.totalorder %s22, 0
      %p105 = por %p103, %p104
      %p106 = scmp.ne.s32.totalorder %s98, %s100
      %p107 = scmp.eq.s32.totalorder %s27, 1
      %p108 = por %p106, %p107
      %p109 = scmp.ne.s32.totalorder %s100, %s101
      %p110 = scmp.eq.s32.totalorder %s27, 0
      %p111 = por %p109, %p110
      %p112 = scmp.ne.s32.totalorder %s100, %s101
      %p113 = scmp.eq.s32.totalorder %s28, 1
      %p114 = por %p112, %p113
      %p116 = scmp.ne.s32.totalorder %s101, %s115
      %p117 = scmp.eq.s32.totalorder %s28, 0
      %p118 = por %p116, %p117
      %s120 = sadd.s32 %s119, 1
      %p123 = scmp.eq.s32.totalorder %s22, 1
      %p124 = scmp.ne.s32.totalorder %s119, %s121
      %p125 = scmp.eq.s32.totalorder %s22, 0
      %p126 = por %p124, %p125
      %p127 = scmp.ne.s32.totalorder %s119, %s121
      %p128 = scmp.eq.s32.totalorder %s27, 1
      %p129 = por %p127, %p128
      %p130 = scmp.ne.s32.totalorder %s121, %s122
      %p131 = scmp.eq.s32.totalorder %s27, 0
      %p132 = por %p130, %p131
      %p133 = scmp.ne.s32.totalorder %s121, %s122
      %p134 = scmp.eq.s32.totalorder %s28, 1
      %p135 = por %p133, %p134
      %p137 = scmp.ne.s32.totalorder %s122, %s136
      %p138 = scmp.eq.s32.totalorder %s28, 0
      %p139 = por %p137, %p138
      %s141 = sadd.s32 %s140, 1
      %p144 = scmp.eq.s32.totalorder %s22, 1
      %p145 = scmp.ne.s32.totalorder %s140, %s142
      %p146 = scmp.eq.s32.totalorder %s22, 0
      %p147 = por %p145, %p146
      %p148 = scmp.ne.s32.totalorder %s140, %s142
      %p149 = scmp.eq.s32.totalorder %s27, 1
      %p150 = por %p148, %p149
      %p151 = scmp.ne.s32.totalorder %s142, %s143
      %p152 = scmp.eq.s32.totalorder %s27, 0
      %p153 = por %p151, %p152
      %p154 = scmp.ne.s32.totalorder %s142, %s143
      %p155 = scmp.eq.s32.totalorder %s28, 1
      %p156 = por %p154, %p155
      %p158 = scmp.ne.s32.totalorder %s143, %s157
      %p159 = scmp.eq.s32.totalorder %s28, 0
      %p160 = por %p158, %p159
      %s162 = sadd.s32 %s161, 1
      %p165 = scmp.eq.s32.totalorder %s22, 1
      %p166 = scmp.ne.s32.totalorder %s161, %s163
      %p167 = scmp.eq.s32.totalorder %s22, 0
      %p168 = por %p166, %p167
      %p169 = scmp.ne.s32.totalorder %s161, %s163
      %p170 = scmp.eq.s32.totalorder %s27, 1
      %p171 = por %p169, %p170
      %p172 = scmp.ne.s32.totalorder %s163, %s164
      %p173 = scmp.eq.s32.totalorder %s27, 0
      %p174 = por %p172, %p173
      %p175 = scmp.ne.s32.totalorder %s163, %s164
      %p176 = scmp.eq.s32.totalorder %s28, 1
      %p177 = por %p175, %p176
      %p179 = scmp.ne.s32.totalorder %s164, %s178
      %p180 = scmp.eq.s32.totalorder %s28, 0
      %p181 = por %p179, %p180
      %s183 = sadd.s32 %s182, 1
      %p186 = scmp.eq.s32.totalorder %s22, 1
      %p187 = scmp.ne.s32.totalorder %s182, %s184
      %p188 = scmp.eq.s32.totalorder %s22, 0
      %p189 = por %p187, %p188
      %p190 = scmp.ne.s32.totalorder %s182, %s184
      %p191 = scmp.eq.s32.totalorder %s27, 1
      %p192 = por %p190, %p191
      %p193 = scmp.ne.s32.totalorder %s184, %s185
      %p194 = scmp.eq.s32.totalorder %s27, 0
      %p195 = por %p193, %p194
      %p196 = scmp.ne.s32.totalorder %s184, %s185
      %p197 = scmp.eq.s32.totalorder %s28, 1
      %p198 = por %p196, %p197
      %p200 = scmp.ne.s32.totalorder %s185, %s199
      %p201 = scmp.eq.s32.totalorder %s28, 0
      %p202 = por %p200, %p201
      %s204 = sadd.s32 %s203, 1
      %p207 = scmp.eq.s32.totalorder %s22, 1
      %p208 = scmp.ne.s32.totalorder %s203, %s205
      %p209 = scmp.eq.s32.totalorder %s22, 0
      %p210 = por %p208, %p209
      %p211 = scmp.ne.s32.totalorder %s203, %s205
      %p212 = scmp.eq.s32.totalorder %s27, 1
      %p213 = por %p211, %p212
      %p214 = scmp.ne.s32.totalorder %s205, %s206
      %p215 = scmp.eq.s32.totalorder %s27, 0
      %p216 = por %p214, %p215
      %p217 = scmp.ne.s32.totalorder %s205, %s206
      %p218 = scmp.eq.s32.totalorder %s28, 1
      %p219 = por %p217, %p218
      %p221 = scmp.ne.s32.totalorder %s206, %s220
      %p222 = scmp.eq.s32.totalorder %s28, 0
      %p223 = por %p221, %p222
      %s225 = sadd.s32 %s224, 1
      %p228 = scmp.eq.s32.totalorder %s22, 1
      %p229 = scmp.ne.s32.totalorder %s224, %s226
      %p230 = scmp.eq.s32.totalorder %s22, 0
      %p231 = por %p229, %p230
      %p232 = scmp.ne.s32.totalorder %s224, %s226
      %p233 = scmp.eq.s32.totalorder %s27, 1
      %p234 = por %p232, %p233
      %p235 = scmp.ne.s32.totalorder %s226, %s227
      %p236 = scmp.eq.s32.totalorder %s27, 0
      %p237 = por %p235, %p236
      %p238 = scmp.ne.s32.totalorder %s226, %s227
      %p239 = scmp.eq.s32.totalorder %s28, 1
      %p240 = por %p238, %p239
      %p242 = scmp.ne.s32.totalorder %s227, %s241
      %p243 = scmp.eq.s32.totalorder %s28, 0
      %p244 = por %p242, %p243
      %s246 = sadd.s32 %s245, 1
      %p249 = scmp.eq.s32.totalorder %s22, 1
      %p250 = scmp.ne.s32.totalorder %s245, %s247
      %p251 = scmp.eq.s32.totalorder %s22, 0
      %p252 = por %p250, %p251
      %p253 = scmp.ne.s32.totalorder %s245, %s247
      %p254 = scmp.eq.s32.totalorder %s27, 1
      %p255 = por %p253, %p254
      %p256 = scmp.ne.s32.totalorder %s247, %s248
      %p257 = scmp.eq.s32.totalorder %s27, 0
      %p258 = por %p256, %p257
      %p259 = scmp.ne.s32.totalorder %s247, %s248
      %p260 = scmp.eq.s32.totalorder %s28, 1
      %p261 = por %p259, %p260
      %p263 = scmp.ne.s32.totalorder %s248, %s262
      %p264 = scmp.eq.s32.totalorder %s28, 0
      %p265 = por %p263, %p264
      %s267 = sadd.s32 %s266, 1
      %p270 = scmp.eq.s32.totalorder %s22, 1
      %p271 = scmp.ne.s32.totalorder %s266, %s268
      %p272 = scmp.eq.s32.totalorder %s22, 0
      %p273 = por %p271, %p272
      %p274 = scmp.ne.s32.totalorder %s266, %s268
      %p275 = scmp.eq.s32.totalorder %s27, 1
      %p276 = por %p274, %p275
      %p277 = scmp.ne.s32.totalorder %s268, %s269
      %p278 = scmp.eq.s32.totalorder %s27, 0
      %p279 = por %p277, %p278
      %p280 = scmp.ne.s32.totalorder %s268, %s269
      %p281 = scmp.eq.s32.totalorder %s28, 1
      %p282 = por %p280, %p281
      %p284 = scmp.ne.s32.totalorder %s269, %s283
      %p285 = scmp.eq.s32.totalorder %s28, 0
      %p286 = por %p284, %p285
      %s288 = sadd.s32 %s287, 1
      %p291 = scmp.eq.s32.totalorder %s22, 1
      %p292 = scmp.ne.s32.totalorder %s287, %s289
      %p293 = scmp.eq.s32.totalorder %s22, 0
      %p294 = por %p292, %p293
      %p295 = scmp.ne.s32.totalorder %s287, %s289
      %p296 = scmp.eq.s32.totalorder %s27, 1
      %p297 = por %p295, %p296
      %p298 = scmp.ne.s32.totalorder %s289, %s290
      %p299 = scmp.eq.s32.totalorder %s27, 0
      %p300 = por %p298, %p299
      %p301 = scmp.ne.s32.totalorder %s289, %s290
      %p302 = scmp.eq.s32.totalorder %s28, 1
      %p303 = por %p301, %p302
      %p305 = scmp.ne.s32.totalorder %s290, %s304
      %p306 = scmp.eq.s32.totalorder %s28, 0
      %p307 = por %p305, %p306
      %s308 = ssub.s32 %s22, %s29
      %p309 = scmp.eq.s32.totalorder %s308, 0
      %s311 = sadd.s32 %s310, 1
      %s312 = scalar_select %p309, %s310, %s311
      %p315 = pneg %p309
      %p316 = scmp.eq.s32.totalorder %s22, 1
      %p317 = por %p315, %p316
      %p318 = scmp.ne.s32.totalorder %s310, %s313
      %p319 = scmp.eq.s32.totalorder %s22, 0
      %p320 = por %p318, %p319
      %p321 = scmp.ne.s32.totalorder %s310, %s313
      %p322 = scmp.eq.s32.totalorder %s27, 1
      %p323 = por %p321, %p322
      %p324 = scmp.ne.s32.totalorder %s313, %s314
      %p325 = scmp.eq.s32.totalorder %s27, 0
      %p326 = por %p324, %p325
      %p327 = scmp.ne.s32.totalorder %s313, %s314
      %p328 = scmp.eq.s32.totalorder %s28, 1
      %p329 = por %p327, %p328
      %p331 = scmp.ne.s32.totalorder %s314, %s330
      %p332 = scmp.eq.s32.totalorder %s28, 0
      %p333 = por %p331, %p332
      %p334 = scmp.le.s32.totalorder 1, %s22
      %p335 = scmp.lt.s32.totalorder %s22, 3
      %p336 = pnand %p334, %p335
      %p337 = pneg %p336
      // Predicated region
      $region9: #{tpu_custom_call.1} parent=5 // pred_check
        _
      $region10: #{tpu_custom_call.1} parent=5 // pred_check_branch
        %339 = sbr.rel (%p336) target = $region12
      $region11: #{tpu_custom_call.1} parent=5 // pred_region
        %s340 = ssub.s32 %s22, 1
        // Predicated region
        $region13: #{tpu_custom_call.1} parent=11 // pred_check
          %p341 = pneg %p69
        $region14: #{tpu_custom_call.1} parent=11 // pred_check_branch
          %343 = sbr.rel (%p341) target = $region16
        $region15: #{tpu_custom_call.1} parent=11 // pred_region
          _
        $region16: #{tpu_custom_call.1} parent=11 // pred_fallthru
          _
        // Predicated region
        $region17: #{tpu_custom_call.1} parent=11 // pred_check
          %p344 = pneg %p90
        $region18: #{tpu_custom_call.1} parent=11 // pred_check_branch
          %346 = sbr.rel (%p344) target = $region20
        $region19: #{tpu_custom_call.1} parent=11 // pred_region
          _
        $region20: #{tpu_custom_call.1} parent=11 // pred_fallthru
          _
        // Predicated region
        $region21: #{tpu_custom_call.1} parent=11 // pred_check
          %p347 = pneg %p111
        $region22: #{tpu_custom_call.1} parent=11 // pred_check_branch
          %349 = sbr.rel (%p347) target = $region24
        $region23: #{tpu_custom_call.1} parent=11 // pred_region
          _
        $region24: #{tpu_custom_call.1} parent=11 // pred_fallthru
          _
        // Predicated region
        $region25: #{tpu_custom_call.1} parent=11 // pred_check
          %p350 = pneg %p132
        $region26: #{tpu_custom_call.1} parent=11 // pred_check_branch
          %352 = sbr.rel (%p350) target = $region28
        $region27: #{tpu_custom_call.1} parent=11 // pred_region
          _
        $region28: #{tpu_custom_call.1} parent=11 // pred_fallthru
          _
        // Predicated region
        $region29: #{tpu_custom_call.1} parent=11 // pred_check
          %p353 = pneg %p153
        $region30: #{tpu_custom_call.1} parent=11 // pred_check_branch
          %355 = sbr.rel (%p353) target = $region32
        $region31: #{tpu_custom_call.1} parent=11 // pred_region
          _
        $region32: #{tpu_custom_call.1} parent=11 // pred_fallthru
          _
        // Predicated region
        $region33: #{tpu_custom_call.1} parent=11 // pred_check
          %p356 = pneg %p174
        $region34: #{tpu_custom_call.1} parent=11 // pred_check_branch
          %358 = sbr.rel (%p356) target = $region36
        $region35: #{tpu_custom_call.1} parent=11 // pred_region
          _
        $region36: #{tpu_custom_call.1} parent=11 // pred_fallthru
          _
        // Predicated region
        $region37: #{tpu_custom_call.1} parent=11 // pred_check
          %p359 = pneg %p195
        $region38: #{tpu_custom_call.1} parent=11 // pred_check_branch
          %361 = sbr.rel (%p359) target = $region40
        $region39: #{tpu_custom_call.1} parent=11 // pred_region
          _
        $region40: #{tpu_custom_call.1} parent=11 // pred_fallthru
          _
        // Predicated region
        $region41: #{tpu_custom_call.1} parent=11 // pred_check
          %p362 = pneg %p216
        $region42: #{tpu_custom_call.1} parent=11 // pred_check_branch
          %364 = sbr.rel (%p362) target = $region44
        $region43: #{tpu_custom_call.1} parent=11 // pred_region
          _
        $region44: #{tpu_custom_call.1} parent=11 // pred_fallthru
          _
        // Predicated region
        $region45: #{tpu_custom_call.1} parent=11 // pred_check
          %p365 = pneg %p237
        $region46: #{tpu_custom_call.1} parent=11 // pred_check_branch
          %367 = sbr.rel (%p365) target = $region48
        $region47: #{tpu_custom_call.1} parent=11 // pred_region
          _
        $region48: #{tpu_custom_call.1} parent=11 // pred_fallthru
          _
        // Predicated region
        $region49: #{tpu_custom_call.1} parent=11 // pred_check
          %p368 = pneg %p258
        $region50: #{tpu_custom_call.1} parent=11 // pred_check_branch
          %370 = sbr.rel (%p368) target = $region52
        $region51: #{tpu_custom_call.1} parent=11 // pred_region
          _
        $region52: #{tpu_custom_call.1} parent=11 // pred_fallthru
          _
        // Predicated region
        $region53: #{tpu_custom_call.1} parent=11 // pred_check
          %p371 = pneg %p279
        $region54: #{tpu_custom_call.1} parent=11 // pred_check_branch
          %373 = sbr.rel (%p371) target = $region56
        $region55: #{tpu_custom_call.1} parent=11 // pred_region
          _
        $region56: #{tpu_custom_call.1} parent=11 // pred_fallthru
          _
        // Predicated region
        $region57: #{tpu_custom_call.1} parent=11 // pred_check
          %p374 = pneg %p300
        $region58: #{tpu_custom_call.1} parent=11 // pred_check_branch
          %376 = sbr.rel (%p374) target = $region60
        $region59: #{tpu_custom_call.1} parent=11 // pred_region
          _
        $region60: #{tpu_custom_call.1} parent=11 // pred_fallthru
          _
      $region12: #{tpu_custom_call.1} parent=5 // pred_fallthru
        _
      %p377 = scmp.lt.s32.totalorder %s22, 2
      // Predicated region
      $region61: #{tpu_custom_call.1} parent=5 // pred_check
        %p378 = pneg %p377
      $region62: #{tpu_custom_call.1} parent=5 // pred_check_branch
        %380 = sbr.rel (%p378) target = $region64
      $region63: #{tpu_custom_call.1} parent=5 // pred_region
        // Predicated region
        $region65: #{tpu_custom_call.1} parent=63 // pred_check
          %p381 = pneg %p42
        $region66: #{tpu_custom_call.1} parent=63 // pred_check_branch
          %383 = sbr.rel (%p381) target = $region68
        $region67: #{tpu_custom_call.1} parent=63 // pred_region
          %p384 = scmp.lt.s32.totalorder %s22, 1
          %s385 = scalar_select %p384, %s22, 1
          %s386 = smul.addr %s385, 8
          %s387 = scalar_lea.vmem %s0, %s386
        $region68: #{tpu_custom_call.1} parent=63 // pred_fallthru
          _
      $region64: #{tpu_custom_call.1} parent=5 // pred_fallthru
        _
      %p388 = scmp.le.s32.totalorder 1, %s22
      %p389 = scmp.lt.s32.totalorder %s22, 3
      %p390 = pnand %p388, %p389
      %p391 = pneg %p390
      // Predicated region
      $region69: #{tpu_custom_call.1} parent=5 // pred_check
        _
      $region70: #{tpu_custom_call.1} parent=5 // pred_check_branch
        %393 = sbr.rel (%p390) target = $region72
      $region71: #{tpu_custom_call.1} parent=5 // pred_region
        %s394 = ssub.s32 %s22, 1
        %p395 = scmp.lt.s32.totalorder %s27, 1
        %s396 = scalar_select %p395, %s27, 1
        %s397 = smul.addr %s396, 8
        %s398 = scalar_lea.vmem %s0, %s397
        %p399 = pneg %p48
        %p400 = pneg %p45
        %p401 = pneg %p69
        %p402 = pneg %p66
        %p403 = pneg %p90
        %p404 = pneg %p87
        %p405 = pneg %p111
        %p406 = pneg %p108
        %p407 = pneg %p132
        %p408 = pneg %p129
        %p409 = pneg %p153
        %p410 = pneg %p150
        %p411 = pneg %p174
        %p412 = pneg %p171
        %p413 = pneg %p195
        %p414 = pneg %p192
        %p415 = pneg %p216
        %p416 = pneg %p213
        %p417 = pneg %p237
        %p418 = pneg %p234
        %p419 = pneg %p258
        %p420 = pneg %p255
        %p421 = pneg %p279
        %p422 = pneg %p276
        %p423 = pneg %p300
        %p424 = pneg %p297
        %p425 = pneg %p326
        %p426 = pneg %p323
        %s427 = sand.u32 %s313, 1
        %s428 = scalar_lea.sflag [#allocation4], %s427
        %s429 = sand.u32 %s313, 1
        %s430 = smul.addr %s429, 8
        %s431 = scalar_lea.vmem [#allocation3], %s430
        %p432 = scmp.lt.s32.totalorder %s27, 1
        %s433 = scalar_select %p432, %s27, 1
        %s434 = smul.addr %s433, 8
        %s435 = scalar_lea.vmem %s0, %s434
        %v437 = vld [vmem:[%s435] sm:$0xff]
        %v438 = vld [vmem:[%s1] sm:$0x1]
        %v439 = vld [vmem:[%s2] sm:$0x1]
        %vm440 = vcmask 261120
        %v441 = vsel %vm440, %v437, 0.0
        %442 = vadd.xlane.f32.xlu0 %v441
        %v443 = vpop.xlane.xlu0 %442
        %v444 = vrcp.pop 32.0
        %v445 = vmul.f32 32.0, %v444
        %v446 = vsub.f32 1.0, %v445
        %v447 = vmul.f32 %v444, %v446
        %v448 = vadd.f32 %v444, %v447
        %vm449 = vweird.f32 %v444
        %v450 = vsel %vm449, %v444, %v448
        %v451 = vmul.f32 %v443, %v450
        %v452 = vsub.f32 %v437, %v451
        %v453 = vmul.f32 %v452, %v452
        %v454 = vsel %vm440, %v453, 0.0
        %455 = vadd.xlane.f32.xlu0 %v454
        %v456 = vpop.xlane.xlu0 %455
        %v457 = vmul.f32 %v456, %v450
        %v458 = vadd.f32 %v457, 1e-06
        %v459 = vrsqrt.pop %v458
        %v460 = vmul.f32 %v459, %v458
        %v461 = vmul.f32 %v460, %v459
        %v462 = vmul.f32 0.5, %v461
        %v463 = vsub.f32 1.5, %v462
        %v464 = vmul.f32 %v459, %v463
        %vm465 = vweird.f32 %v458
        %vm466 = vweird.f32 %v459
        %vm467 = vmor %vm465, %vm466
        %v468 = vsel %vm467, %v459, %v464
        %v469 = vmul.f32 %v452, %v468
        %v471 = vperm.slane %v438, 0
        %v473 = vmul.f32 %v469, %v471
        %v475 = vperm.slane %v439, 0
        %v477 = vadd.f32 %v473, %v475
        %v478 = vpack.c.bf16 %v477, %v477
        %v479 = vld [vmem:[%s3] sm:$0xf]
        %v480 = vld [vmem:[%s3 + $0x4] sm:$0xf]
        %v481 = vld [vmem:[%s3 + $0x8] sm:$0xf]
        %v482 = vld [vmem:[%s3 + $0xc] sm:$0xf]
        %v483 = vld [vmem:[%s4] sm:$0x1]
        %v485 = vperm.slane %v483, 0
        %v491 = vunpack.c.l.b16 %v479
        %v492 = vunpack.c.l.b16 %v480
        %v493 = vunpack.c.l.b16 %v481
        %v494 = vunpack.c.l.b16 %v482
        %v495 = vpack.c.b16 %v492, %v491
        %v496 = vpack.c.b16 %v494, %v493
        %v500 = vsel %vm440, %v478, 0
        %502 = vmatpush.bf16.msra.mxu0 0
        %503 = vmatpush.bf16.msra.mxu0 0
        %504 = vmatpush.bf16.msra.mxu0 0
        %505 = vmatpush.bf16.msra.mxu0 0
        %506 = vmatpush.bf16.msra.mxu0 0
        %507 = vmatpush.bf16.msra.mxu0 0
        %508 = vmatpush.bf16.msra.mxu0 %v496
        %509 = vmatpush.bf16.msra.mxu0 %v495
        %510 = vmatmul.bf16.gmra.mxu0 %v500
        %v511 = vpop.f32.mrf.mxu0
        %v512 = vadd.f32 %v485, %v511
        %v513 = vpop.f32.mrf.mxu0
        %514 = vdwg.mxu0
        %v515 = vlaneseq
        %v516 = vand.u32 %v515, 127
        %vm517 = vcmp.lt.s32.totalorder %v516, 32
        %v518 = vsel %vm517, 0.35355338, 1.0
        %v519 = vmul.f32 %v512, %v518
        %v520 = vpack.c.bf16 %v519, %v519
        %v522 = vunpack.c.l.b16 %v520
        %v523 = vpack.c.b16 %v522, %v522
        %524 = vrot.lane.b32.xlu0 %v523, 96
        %v525 = vpop.permute.xlu0 %524
        %vm526 = vcmask 64512
        %v528 = vsel %vm526, %v520, 0
        %v531 = vsel %vm526, %v525, 0
        %533 = vmatpush.bf16.xpose.msra.mxu0 0
        %534 = vmatpush.bf16.xpose.msra.mxu0 0
        %535 = vmatpush.bf16.xpose.msra.mxu0 0
        %536 = vmatpush.bf16.xpose.msra.mxu0 0
        %537 = vmatpush.bf16.xpose.msra.mxu0 0
        %538 = vmatpush.bf16.xpose.msra.mxu0 0
        %539 = vmatpush.bf16.xpose.msra.mxu0 0
        %540 = vmatpush.bf16.xpose.msra.mxu0 %v531
        %541 = vmatmul.bf16.gmra.mxu0 %v528
        %v542 = vpop.f32.mrf.mxu0
        %v543 = vadd.f32 0.0, %v542
        %v544 = vpop.f32.mrf.mxu0
        %545 = vdwg.mxu0
        %v546 = vsel %vm526, %v543, -inf
        %547 = vmax.xlane.f32.xlu0 %v546
        %v548 = vpop.xlane.xlu0 %547
        %v549 = vsub.f32 %v543, %v548
        %v550 = vmul.f32 %v549, 1.442695
        %v551 = vpow.pop %v550
        %v552 = vsel %vm526, %v551, 0.0
        %553 = vadd.xlane.f32.xlu0 %v552
        %v554 = vpop.xlane.xlu0 %553
        %v555 = vrcp.pop %v554
        %v556 = vmul.f32 %v551, %v555
        %v557 = vpack.c.bf16 %v556, %v556
        %558 = vrot.lane.b32.xlu0 %v523, 64
        %v559 = vpop.permute.xlu0 %558
        %v561 = vsel %vm526, %v557, 0
        %vm563 = vcmask 1043456
        %v565 = vsel %vm563, %v559, 0
        %567 = vmatpush.bf16.msra.mxu0 0
        %568 = vmatpush.bf16.msra.mxu0 0
        %569 = vmatpush.bf16.msra.mxu0 0
        %570 = vmatpush.bf16.msra.mxu0 0
        %571 = vmatpush.bf16.msra.mxu0 0
        %572 = vmatpush.bf16.msra.mxu0 0
        %573 = vmatpush.bf16.msra.mxu0 0
        %574 = vmatpush.bf16.msra.mxu0 %v565
        %575 = vmatmul.bf16.gmra.mxu0 %v561
        %v576 = vpop.f32.mrf.mxu0
        %v577 = vadd.f32 0.0, %v576
        %v578 = vpop.f32.mrf.mxu0
        %579 = vdwg.mxu0
        %v580 = vpack.c.bf16 %v577, %v577
        %vm581 = vcmask 60416
        %582 = vst.msk [vmem:[#allocation2] sm:$0xf] %vm581, %v580
        %583 = vrot.lane.b32.xlu0 %v523, 120
        %v584 = vpop.permute.xlu0 %583
        %585 = vrot.lane.b32.xlu0 %v523, 88
        %v586 = vpop.permute.xlu0 %585
        %v588 = vsel %vm526, %v584, 0
        %v591 = vsel %vm526, %v586, 0
        %593 = vmatpush.bf16.xpose.msra.mxu0 0
        %594 = vmatpush.bf16.xpose.msra.mxu0 0
        %595 = vmatpush.bf16.xpose.msra.mxu0 0
        %596 = vmatpush.bf16.xpose.msra.mxu0 0
        %597 = vmatpush.bf16.xpose.msra.mxu0 0
        %598 = vmatpush.bf16.xpose.msra.mxu0 0
        %599 = vmatpush.bf16.xpose.msra.mxu0 0
        %600 = vmatpush.bf16.xpose.msra.mxu0 %v591
        %601 = vmatmul.bf16.gmra.mxu0 %v588
        %v602 = vpop.f32.mrf.mxu0
        %v603 = vadd.f32 0.0, %v602
        %v604 = vpop.f32.mrf.mxu0
        %605 = vdwg.mxu0
        %v606 = vsel %vm526, %v603, -inf
        %607 = vmax.xlane.f32.xlu0 %v606
        %v608 = vpop.xlane.xlu0 %607
        %v609 = vsub.f32 %v603, %v608
        %v610 = vmul.f32 %v609, 1.442695
        %v611 = vpow.pop %v610
        %v612 = vsel %vm526, %v611, 0.0
        %613 = vadd.xlane.f32.xlu0 %v612
        %v614 = vpop.xlane.xlu0 %613
        %v615 = vrcp.pop %v614
        %v616 = vmul.f32 %v611, %v615
        %v617 = vpack.c.bf16 %v616, %v616
        %618 = vrot.lane.b32.xlu0 %v523, 56
        %v619 = vpop.permute.xlu0 %618
        %v621 = vsel %vm526, %v617, 0
        %v624 = vsel %vm563, %v619, 0
        %626 = vmatpush.bf16.msra.mxu0 0
        %627 = vmatpush.bf16.msra.mxu0 0
        %628 = vmatpush.bf16.msra.mxu0 0
        %629 = vmatpush.bf16.msra.mxu0 0
        %630 = vmatpush.bf16.msra.mxu0 0
        %631 = vmatpush.bf16.msra.mxu0 0
        %632 = vmatpush.bf16.msra.mxu0 0
        %633 = vmatpush.bf16.msra.mxu0 %v624
        %634 = vmatmul.bf16.gmra.mxu0 %v621
        %v635 = vpop.f32.mrf.mxu0
        %v636 = vadd.f32 0.0, %v635
        %v637 = vpop.f32.mrf.mxu0
        %638 = vdwg.mxu0
        %v639 = vpack.c.bf16 %v636, %v636
        %641 = vrot.lane.b32.xlu0 %v639, 8
        %v642 = vpop.permute.xlu0 %641
        %vm644 = vcmask 126016
        %645 = vst.msk [vmem:[#allocation2] sm:$0xf] %vm644, %v642
        %646 = vrot.lane.b32.xlu0 %v523, 112
        %v647 = vpop.permute.xlu0 %646
        %648 = vrot.lane.b32.xlu0 %v523, 80
        %v649 = vpop.permute.xlu0 %648
        %v651 = vsel %vm526, %v647, 0
        %v654 = vsel %vm526, %v649, 0
        %656 = vmatpush.bf16.xpose.msra.mxu0 0
        %657 = vmatpush.bf16.xpose.msra.mxu0 0
        %658 = vmatpush.bf16.xpose.msra.mxu0 0
        %659 = vmatpush.bf16.xpose.msra.mxu0 0
        %660 = vmatpush.bf16.xpose.msra.mxu0 0
        %661 = vmatpush.bf16.xpose.msra.mxu0 0
        %662 = vmatpush.bf16.xpose.msra.mxu0 0
        %663 = vmatpush.bf16.xpose.msra.mxu0 %v654
        %664 = vmatmul.bf16.gmra.mxu0 %v651
        %v665 = vpop.f32.mrf.mxu0
        %v666 = vadd.f32 0.0, %v665
        %v667 = vpop.f32.mrf.mxu0
        %668 = vdwg.mxu0
        %v669 = vsel %vm526, %v666, -inf
        %670 = vmax.xlane.f32.xlu0 %v669
        %v671 = vpop.xlane.xlu0 %670
        %v672 = vsub.f32 %v666, %v671
        %v673 = vmul.f32 %v672, 1.442695
        %v674 = vpow.pop %v673
        %v675 = vsel %vm526, %v674, 0.0
        %676 = vadd.xlane.f32.xlu0 %v675
        %v677 = vpop.xlane.xlu0 %676
        %v678 = vrcp.pop %v677
        %v679 = vmul.f32 %v674, %v678
        %v680 = vpack.c.bf16 %v679, %v679
        %681 = vrot.lane.b32.xlu0 %v523, 48
        %v682 = vpop.permute.xlu0 %681
        %v684 = vsel %vm526, %v680, 0
        %v687 = vsel %vm563, %v682, 0
        %689 = vmatpush.bf16.msra.mxu0 0
        %690 = vmatpush.bf16.msra.mxu0 0
        %691 = vmatpush.bf16.msra.mxu0 0
        %692 = vmatpush.bf16.msra.mxu0 0
        %693 = vmatpush.bf16.msra.mxu0 0
        %694 = vmatpush.bf16.msra.mxu0 0
        %695 = vmatpush.bf16.msra.mxu0 0
        %696 = vmatpush.bf16.msra.mxu0 %v687
        %697 = vmatmul.bf16.gmra.mxu0 %v684
        %v698 = vpop.f32.mrf.mxu0
        %v699 = vadd.f32 0.0, %v698
        %v700 = vpop.f32.mrf.mxu0
        %701 = vdwg.mxu0
        %v702 = vpack.c.bf16 %v699, %v699
        %704 = vrot.lane.b32.xlu0 %v702, 16
        %v705 = vpop.permute.xlu0 %704
        %vm707 = vcmask 191616
        %708 = vst.msk [vmem:[#allocation2] sm:$0xf] %vm707, %v705
        %709 = vrot.lane.b32.xlu0 %v523, 104
        %v710 = vpop.permute.xlu0 %709
        %711 = vrot.lane.b32.xlu0 %v523, 72
        %v712 = vpop.permute.xlu0 %711
        %v714 = vsel %vm526, %v710, 0
        %v717 = vsel %vm526, %v712, 0
        %719 = vmatpush.bf16.xpose.msra.mxu0 0
        %720 = vmatpush.bf16.xpose.msra.mxu0 0
        %721 = vmatpush.bf16.xpose.msra.mxu0 0
        %722 = vmatpush.bf16.xpose.msra.mxu0 0
        %723 = vmatpush.bf16.xpose.msra.mxu0 0
        %724 = vmatpush.bf16.xpose.msra.mxu0 0
        %725 = vmatpush.bf16.xpose.msra.mxu0 0
        %726 = vmatpush.bf16.xpose.msra.mxu0 %v717
        %727 = vmatmul.bf16.gmra.mxu0 %v714
        %v728 = vpop.f32.mrf.mxu0
        %v729 = vadd.f32 0.0, %v728
        %v730 = vpop.f32.mrf.mxu0
        %731 = vdwg.mxu0
        %v732 = vsel %vm526, %v729, -inf
        %733 = vmax.xlane.f32.xlu0 %v732
        %v734 = vpop.xlane.xlu0 %733
        %v735 = vsub.f32 %v729, %v734
        %v736 = vmul.f32 %v735, 1.442695
        %v737 = vpow.pop %v736
        %v738 = vsel %vm526, %v737, 0.0
        %739 = vadd.xlane.f32.xlu0 %v738
        %v740 = vpop.xlane.xlu0 %739
        %v741 = vrcp.pop %v740
        %v742 = vmul.f32 %v737, %v741
        %v743 = vpack.c.bf16 %v742, %v742
        %744 = vrot.lane.b32.xlu0 %v523, 40
        %v745 = vpop.permute.xlu0 %744
        %v747 = vsel %vm526, %v743, 0
        %v750 = vsel %vm563, %v745, 0
        %752 = vmatpush.bf16.msra.mxu0 0
        %753 = vmatpush.bf16.msra.mxu0 0
        %754 = vmatpush.bf16.msra.mxu0 0
        %755 = vmatpush.bf16.msra.mxu0 0
        %756 = vmatpush.bf16.msra.mxu0 0
        %757 = vmatpush.bf16.msra.mxu0 0
        %758 = vmatpush.bf16.msra.mxu0 0
        %759 = vmatpush.bf16.msra.mxu0 %v750
        %760 = vmatmul.bf16.gmra.mxu0 %v747
        %v761 = vpop.f32.mrf.mxu0
        %v762 = vadd.f32 0.0, %v761
        %v763 = vpop.f32.mrf.mxu0
        %764 = vdwg.mxu0
        %v765 = vpack.c.bf16 %v762, %v762
        %767 = vrot.lane.b32.xlu0 %v765, 24
        %v768 = vpop.permute.xlu0 %767
        %vm770 = vcmask 257216
        %771 = vst.msk [vmem:[#allocation2] sm:$0xf] %vm770, %v768
        %v772 = vld [vmem:[#allocation2] sm:$0xf]
        %v773 = vld [vmem:[%s5] sm:$0xf]
        %v774 = vld [vmem:[%s5 + $0x4] sm:$0xf]
        %v775 = vld [vmem:[%s5 + $0x8] sm:$0xf]
        %v776 = vld [vmem:[%s5 + $0xc] sm:$0xf]
        %v781 = vunpack.c.l.b16 %v773
        %v782 = vunpack.c.l.b16 %v774
        %v783 = vunpack.c.l.b16 %v775
        %v784 = vunpack.c.l.b16 %v776
        %v785 = vpack.c.b16 %v782, %v781
        %v786 = vpack.c.b16 %v784, %v783
        %v790 = vsel %vm440, %v772, 0
        %792 = vmatpush.bf16.msra.mxu0 0
        %793 = vmatpush.bf16.msra.mxu0 0
        %794 = vmatpush.bf16.msra.mxu0 0
        %795 = vmatpush.bf16.msra.mxu0 0
        %796 = vmatpush.bf16.msra.mxu0 0
        %797 = vmatpush.bf16.msra.mxu0 0
        %798 = vmatpush.bf16.msra.mxu0 %v786
        %799 = vmatpush.bf16.msra.mxu0 %v785
        %800 = vmatmul.bf16.gmra.mxu0 %v790
        %v801 = vpop.f32.mrf.mxu0
        %v802 = vadd.f32 0.0, %v801
        %v803 = vpop.f32.mrf.mxu0
        %804 = vdwg.mxu0
        %v805 = vadd.f32 %v437, %v802
        %v806 = vld [vmem:[%s6] sm:$0x1]
        %v808 = vperm.slane %v806, 0
        %v810 = vadd.f32 %v805, %v808
        %v811 = vld [vmem:[%s7] sm:$0x1]
        %v812 = vld [vmem:[%s8] sm:$0x1]
        %v813 = vsel %vm440, %v810, 0.0
        %814 = vadd.xlane.f32.xlu0 %v813
        %v815 = vpop.xlane.xlu0 %814
        %v816 = vmul.f32 %v815, %v450
        %v817 = vsub.f32 %v810, %v816
        %v818 = vmul.f32 %v817, %v817
        %v819 = vsel %vm440, %v818, 0.0
        %820 = vadd.xlane.f32.xlu0 %v819
        %v821 = vpop.xlane.xlu0 %820
        %v822 = vmul.f32 %v821, %v450
        %v823 = vadd.f32 %v822, 1e-06
        %v824 = vrsqrt.pop %v823
        %v825 = vmul.f32 %v824, %v823
        %v826 = vmul.f32 %v825, %v824
        %v827 = vmul.f32 0.5, %v826
        %v828 = vsub.f32 1.5, %v827
        %v829 = vmul.f32 %v824, %v828
        %vm830 = vweird.f32 %v823
        %vm831 = vweird.f32 %v824
        %vm832 = vmor %vm830, %vm831
        %v833 = vsel %vm832, %v824, %v829
        %v834 = vmul.f32 %v817, %v833
        %v836 = vperm.slane %v811, 0
        %v838 = vmul.f32 %v834, %v836
        %v840 = vperm.slane %v812, 0
        %v842 = vadd.f32 %v838, %v840
        %v843 = vpack.c.bf16 %v842, %v842
        %v844 = vld [vmem:[%s9] sm:$0xf]
        %v845 = vld [vmem:[%s9 + $0x4] sm:$0xf]
        %v846 = vld [vmem:[%s9 + $0x8] sm:$0xf]
        %v847 = vld [vmem:[%s9 + $0xc] sm:$0xf]
        %v848 = vld [vmem:[%s10] sm:$0x1]
        %v850 = vperm.slane %v848, 0
        %v856 = vunpack.c.l.b16 %v844
        %v857 = vunpack.c.l.b16 %v845
        %v858 = vunpack.c.l.b16 %v846
        %v859 = vunpack.c.l.b16 %v847
        %v860 = vpack.c.b16 %v857, %v856
        %v861 = vpack.c.b16 %v859, %v858
        %v865 = vsel %vm440, %v843, 0
        %867 = vmatpush.bf16.msra.mxu0 0
        %868 = vmatpush.bf16.msra.mxu0 0
        %869 = vmatpush.bf16.msra.mxu0 0
        %870 = vmatpush.bf16.msra.mxu0 0
        %871 = vmatpush.bf16.msra.mxu0 0
        %872 = vmatpush.bf16.msra.mxu0 0
        %873 = vmatpush.bf16.msra.mxu0 %v861
        %874 = vmatpush.bf16.msra.mxu0 %v860
        %875 = vmatmul.bf16.gmra.mxu0 %v865
        %v876 = vpop.f32.mrf.mxu0
        %v877 = vadd.f32 %v850, %v876
        %v878 = vpop.f32.mrf.mxu0
        %879 = vdwg.mxu0
        %v880 = vmul.f32 %v877, 0.5
        %v881 = vmul.f32 %v877, 0.70710677
        %v882 = vmul.f32 %v881, %v881
        %v883 = vmin.f32 16.0, %v882
        %v884 = vmul.f32 %v883, 2.1237322e-06
        %v885 = vadd.f32 %v884, 0.00028619796
        %v886 = vmul.f32 %v883, %v885
        %v887 = vadd.f32 %v886, 0.0036580483
        %v888 = vmul.f32 %v883, %v887
        %v889 = vadd.f32 %v888, 0.05243302
        %v890 = vmul.f32 %v883, %v889
        %v891 = vadd.f32 %v890, 0.18741608
        %v892 = vmul.f32 %v883, %v891
        %v893 = vadd.f32 %v892, 1.1283791
        %v894 = vmul.f32 %v881, %v893
        %v895 = vmul.f32 %v883, 3.8918573e-05
        %v896 = vadd.f32 %v895, 0.001143296
        %v897 = vmul.f32 %v883, %v896
        %v898 = vadd.f32 %v897, 0.014752088
        %v899 = vmul.f32 %v883, %v898
        %v900 = vadd.f32 %v899, 0.112945676
        %v901 = vmul.f32 %v883, %v900
        %v902 = vadd.f32 %v901, 0.4994258
        %v903 = vmul.f32 %v883, %v902
        %v904 = vadd.f32 %v903, 1.0
        %v905 = vrcp.pop %v904
        %v906 = vmul.f32 %v904, %v905
        %v907 = vsub.f32 1.0, %v906
        %v908 = vmul.f32 %v905, %v907
        %v909 = vadd.f32 %v905, %v908
        %vm910 = vweird.f32 %v904
        %vm911 = vweird.f32 %v905
        %vm912 = vmor %vm910, %vm911
        %v913 = vsel %vm912, %v905, %v909
        %v914 = vand.u32 2147483647, %v904
        %vm915 = vcmp.eq.f32.partialorder %v914, 8.507059e+37
        %v916 = vand.u32 %v904, 2147483648
        %v917 = vor.u32 1.1754944e-38, %v916
        %v918 = vsel %vm915, %v917, %v913
        %v919 = vmul.f32 %v894, %v918
        %v920 = vmin.f32 %v919, 1.0
        %v921 = vmax.f32 %v920, -1.0
        %v922 = vadd.f32 %v921, 1.0
        %v923 = vmul.f32 %v880, %v922
        %v924 = vpack.c.bf16 %v923, %v923
        %v925 = vld [vmem:[%s11] sm:$0xf]
        %v926 = vld [vmem:[%s11 + $0x4] sm:$0xf]
        %v927 = vld [vmem:[%s11 + $0x8] sm:$0xf]
        %v928 = vld [vmem:[%s11 + $0xc] sm:$0xf]
        %v929 = vld [vmem:[%s11 + $0x10] sm:$0xf]
        %v930 = vld [vmem:[%s11 + $0x14] sm:$0xf]
        %v931 = vld [vmem:[%s11 + $0x18] sm:$0xf]
        %v932 = vld [vmem:[%s11 + $0x1c] sm:$0xf]
        %v933 = vld [vmem:[%s11 + $0x20] sm:$0xf]
        %v934 = vld [vmem:[%s11 + $0x24] sm:$0xf]
        %v935 = vld [vmem:[%s11 + $0x28] sm:$0xf]
        %v936 = vld [vmem:[%s11 + $0x2c] sm:$0xf]
        %v937 = vld [vmem:[%s11 + $0x30] sm:$0xf]
        %v938 = vld [vmem:[%s11 + $0x34] sm:$0xf]
        %v939 = vld [vmem:[%s11 + $0x38] sm:$0xf]
        %v940 = vld [vmem:[%s11 + $0x3c] sm:$0xf]
        %v941 = vld [vmem:[%s12] sm:$0x1]
        %v943 = vperm.slane %v941, 0
        %v961 = vunpack.c.l.b16 %v925
        %v962 = vunpack.c.l.b16 %v926
        %v963 = vunpack.c.l.b16 %v927
        %v964 = vunpack.c.l.b16 %v928
        %v965 = vunpack.c.l.b16 %v929
        %v966 = vunpack.c.l.b16 %v930
        %v967 = vunpack.c.l.b16 %v931
        %v968 = vunpack.c.l.b16 %v932
        %v969 = vunpack.c.l.b16 %v933
        %v970 = vunpack.c.l.b16 %v934
        %v971 = vunpack.c.l.b16 %v935
        %v972 = vunpack.c.l.b16 %v936
        %v973 = vunpack.c.l.b16 %v937
        %v974 = vunpack.c.l.b16 %v938
        %v975 = vunpack.c.l.b16 %v939
        %v976 = vunpack.c.l.b16 %v940
        %v977 = vpack.c.b16 %v962, %v961
        %v978 = vpack.c.b16 %v964, %v963
        %v979 = vpack.c.b16 %v966, %v965
        %v980 = vpack.c.b16 %v968, %v967
        %v981 = vpack.c.b16 %v970, %v969
        %v982 = vpack.c.b16 %v972, %v971
        %v983 = vpack.c.b16 %v974, %v973
        %v984 = vpack.c.b16 %v976, %v975
        %993 = vmatpush.bf16.msra.mxu0 %v984
        %994 = vmatpush.bf16.msra.mxu0 %v983
        %995 = vmatpush.bf16.msra.mxu0 %v982
        %996 = vmatpush.bf16.msra.mxu0 %v981
        %997 = vmatpush.bf16.msra.mxu0 %v980
        %998 = vmatpush.bf16.msra.mxu0 %v979
        %999 = vmatpush.bf16.msra.mxu0 %v978
        %1000 = vmatpush.bf16.msra.mxu0 %v977
        %1001 = vmatmul.bf16.gmra.mxu0 %v924
        %v1002 = vpop.f32.mrf.mxu0
        %v1003 = vadd.f32 %v943, %v1002
        %v1004 = vpop.f32.mrf.mxu0
        %1005 = vdwg.mxu0
        %v1006 = vadd.f32 %v810, %v1003
        %1007 = vst.msk [vmem:[%s431] sm:$0xff] %vm440, %v1006
        %s1008 = sand.u32 %s313, 1
        %s1009 = scalar_lea.sflag [#allocation4], %s1008
        %s1010 = sand.u32 %s313, 1
        %s1011 = smul.addr %s1010, 8
        %s1012 = scalar_lea.vmem [#allocation3], %s1011
        // Predicated region
        $region73: #{tpu_custom_call.1} parent=71 // pred_check
          %p1013 = pneg %p323
        $region74: #{tpu_custom_call.1} parent=71 // pred_check_branch
          %1015 = sbr.rel (%p1013) target = $region76
        $region75: #{tpu_custom_call.1} parent=71 // pred_region
          %1017 = vsyncadd %s1009, 0
          %s1018 = smul.addr %s27, 8
          %s1019 = scalar_lea.hbm %s13, %s1018
          %s1021 = sshll.u32 %s1012, 4
          %s1022 = int_to_ptr.vmem [resolvable:$true] %s1021
          %s1023 = sshll.u32 %s1019, 4
          %s1024 = int_to_ptr.hbm [resolvable:$true] %s1023
          %1026 = dma.vmem_to_hbm [thread:$0]  %s1022, 128, %s1024, %s1009
        $region76: #{tpu_custom_call.1} parent=71 // pred_fallthru
          _
      $region72: #{tpu_custom_call.1} parent=5 // pred_fallthru
        _
      %p1027 = scmp.le.s32.totalorder 2, %s22
      // Predicated region
      $region77: #{tpu_custom_call.1} parent=5 // pred_check
        %p1028 = pneg %p1027
      $region78: #{tpu_custom_call.1} parent=5 // pred_check_branch
        %1030 = sbr.rel (%p1028) target = $region80
      $region79: #{tpu_custom_call.1} parent=5 // pred_region
        %s1031 = ssub.s32 %s22, 2
        // Predicated region
        $region81: #{tpu_custom_call.1} parent=79 // pred_check
          %p1032 = pneg %p329
        $region82: #{tpu_custom_call.1} parent=79 // pred_check_branch
          %1034 = sbr.rel (%p1032) target = $region84
        $region83: #{tpu_custom_call.1} parent=79 // pred_region
          %s1035 = sand.u32 %s314, 1
          %s1036 = scalar_lea.sflag [#allocation4], %s1035
          %s1037 = sand.u32 %s314, 1
          %s1038 = smul.addr %s1037, 8
          %s1039 = scalar_lea.vmem [#allocation3], %s1038
          %1041 = dma.done %s1036, 128
        $region84: #{tpu_custom_call.1} parent=79 // pred_fallthru
          _
      $region80: #{tpu_custom_call.1} parent=5 // pred_fallthru
        _
    $region6: #{tpu_custom_call.1} parent=1 // loop_footer
      %s26 = sadd.s32 1, %s22
    $region7: #{tpu_custom_call.1} parent=1 // loop_footer_branch
      %21 = sbr.rel target = $region3
    $region8: #{tpu_custom_call.1} parent=1 // loop_exit
      _
    %1042 = vsyncpa [#allocation4], 1
    %s1043 = scalar_lea.sflag [#allocation4], 1
    %1044 = vsyncpa %s1043, 1

// kernel: tpu_custom_call.1
$region0: #{tpu_custom_call.1}
  #allocation0 [shape = 'u32[]', space=smem, size = 0x4, offset = 0x4, fixed_abs, tag = 'smem constant byte address 0x4 - core index']
  #allocation1 [shape = 'u32[72,128]{1,0:T(1,128)}', space=vmem, size = 0x9000, scoped, tag = 'internal scratch']
  #allocation2 [shape = 'bf16[8,32]{1,0:T(8,128)(2,1)}', space=vmem, size = 0x800, scoped, tag = 'scratch operand']
  %s0 = inlined_call_operand.vmem [shape: f32[2,8,32], index: 0, kind: input, shape index: {}]
  %s1 = inlined_call_operand.vmem [shape: f32[1,32], index: 1, kind: input, shape index: {}]
  %s2 = inlined_call_operand.vmem [shape: f32[1,32], index: 2, kind: input, shape index: {}]
  %s3 = inlined_call_operand.vmem [shape: bf16[32,96], index: 3, kind: input, shape index: {}]
  %s4 = inlined_call_operand.vmem [shape: f32[1,96], index: 4, kind: input, shape index: {}]
  %s5 = inlined_call_operand.vmem [shape: bf16[32,32], index: 5, kind: input, shape index: {}]
  %s6 = inlined_call_operand.vmem [shape: f32[1,32], index: 6, kind: input, shape index: {}]
  %s7 = inlined_call_operand.vmem [shape: f32[1,32], index: 7, kind: input, shape index: {}]
  %s8 = inlined_call_operand.vmem [shape: f32[1,32], index: 8, kind: input, shape index: {}]
  %s9 = inlined_call_operand.vmem [shape: bf16[32,128], index: 9, kind: input, shape index: {}]
  %s10 = inlined_call_operand.vmem [shape: f32[1,128], index: 10, kind: input, shape index: {}]
  %s11 = inlined_call_operand.vmem [shape: bf16[128,32], index: 11, kind: input, shape index: {}]
  %s12 = inlined_call_operand.vmem [shape: f32[1,32], index: 12, kind: input, shape index: {}]
  %s13 = inlined_call_operand.hbm [shape: f32[2,8,32], index: 13, kind: output, shape index: {}]
  %s14 = sld [smem:[#allocation0]]
  $region85: #{tpu_custom_call.1} parent=0
    _
  %s16 = ssub.s32 1, %s14
  %s17 = scalar_select 0, %s16, %s14
  $region1: #{tpu_custom_call.1} parent=0
    #allocation3 [shape = 'u8[8192]{0}', space=vmem, size = 0x2000, scoped, tag = 'output window, operand 0']
    #allocation4 [shape = 's32[2]{0}', space=sflag, size = 0x8, scoped, tag = 'scoped memory for tpu_custom_call.1']
    %18 = vsyncpa [#allocation4], 0
    %s19 = scalar_lea.sflag [#allocation4], 1
    %20 = vsyncpa %s19, 0
    loop: start=0, step=1, limit=4
    $region2: #{tpu_custom_call.1} parent=1 // loop_pre_header
      _
    $region3: #{tpu_custom_call.1} parent=1 // loop_header
      %s22 = sphi 0, %s26
      %p23 = scmp.ge.s32.totalorder %s22, 4
      %s32 = sphi 0, %s34
      %s35 = sphi 0, %s32
      %s36 = sphi 0, %s35
      %s52 = sphi 0, %s36
      %s56 = sphi 0, %s56
      %s58 = sphi 0, %s56
      %s59 = sphi 0, %s58
      %s73 = sphi 0, %s59
      %s77 = sphi 0, %s77
      %s79 = sphi 0, %s77
      %s80 = sphi 0, %s79
      %s94 = sphi 0, %s80
      %s98 = sphi 0, %s98
      %s100 = sphi 0, %s98
      %s101 = sphi 0, %s100
      %s115 = sphi 0, %s101
      %s119 = sphi 0, %s119
      %s121 = sphi 0, %s119
      %s122 = sphi 0, %s121
      %s136 = sphi 0, %s122
      %s140 = sphi 0, %s140
      %s142 = sphi 0, %s140
      %s143 = sphi 0, %s142
      %s157 = sphi 0, %s143
      %s161 = sphi 0, %s161
      %s163 = sphi 0, %s161
      %s164 = sphi 0, %s163
      %s178 = sphi 0, %s164
      %s182 = sphi 0, %s182
      %s184 = sphi 0, %s182
      %s185 = sphi 0, %s184
      %s199 = sphi 0, %s185
      %s203 = sphi 0, %s203
      %s205 = sphi 0, %s203
      %s206 = sphi 0, %s205
      %s220 = sphi 0, %s206
      %s224 = sphi 0, %s224
      %s226 = sphi 0, %s224
      %s227 = sphi 0, %s226
      %s241 = sphi 0, %s227
      %s245 = sphi 0, %s245
      %s247 = sphi 0, %s245
      %s248 = sphi 0, %s247
      %s262 = sphi 0, %s248
      %s266 = sphi 0, %s266
      %s268 = sphi 0, %s266
      %s269 = sphi 0, %s268
      %s283 = sphi 0, %s269
      %s287 = sphi 0, %s287
      %s289 = sphi 0, %s287
      %s290 = sphi 0, %s289
      %s304 = sphi 0, %s290
      %s310 = sphi 0, %s312
      %s313 = sphi 0, %s310
      %s314 = sphi 0, %s313
      %s330 = sphi 0, %s314
    $region4: #{tpu_custom_call.1} parent=1 // loop_header_branch
      %25 = sbr.rel (%p23) target = $region8
    $region5: #{tpu_custom_call.1} parent=1 // loop_body
      %s27 = ssub.s32 %s22, 1
      %s28 = ssub.s32 %s22, 2
      %s29 = sadd.s32 %s22, 1
      %s30 = ssub.s32 %s22, %s29
      %p31 = scmp.eq.s32.totalorder %s30, 0
      %s33 = sadd.s32 %s32, 1
      %s34 = scalar_select %p31, %s32, %s33
      %p37 = pneg %p31
      %p38 = scmp.eq.s32.totalorder %s22, 1
      %p39 = por %p37, %p38
      %p40 = scmp.ne.s32.totalorder %s32, %s35
      %p41 = scmp.eq.s32.totalorder %s22, 0
      %p42 = por %p40, %p41
      %p43 = scmp.ne.s32.totalorder %s32, %s35
      %p44 = scmp.eq.s32.totalorder %s27, 1
      %p45 = por %p43, %p44
      %p46 = scmp.ne.s32.totalorder %s35, %s36
      %p47 = scmp.eq.s32.totalorder %s27, 0
      %p48 = por %p46, %p47
      %p49 = scmp.ne.s32.totalorder %s35, %s36
      %p50 = scmp.eq.s32.totalorder %s28, 1
      %p51 = por %p49, %p50
      %p53 = scmp.ne.s32.totalorder %s36, %s52
      %p54 = scmp.eq.s32.totalorder %s28, 0
      %p55 = por %p53, %p54
      %s57 = sadd.s32 %s56, 1
      %p60 = scmp.eq.s32.totalorder %s22, 1
      %p61 = scmp.ne.s32.totalorder %s56, %s58
      %p62 = scmp.eq.s32.totalorder %s22, 0
      %p63 = por %p61, %p62
      %p64 = scmp.ne.s32.totalorder %s56, %s58
      %p65 = scmp.eq.s32.totalorder %s27, 1
      %p66 = por %p64, %p65
      %p67 = scmp.ne.s32.totalorder %s58, %s59
      %p68 = scmp.eq.s32.totalorder %s27, 0
      %p69 = por %p67, %p68
      %p70 = scmp.ne.s32.totalorder %s58, %s59
      %p71 = scmp.eq.s32.totalorder %s28, 1
      %p72 = por %p70, %p71
      %p74 = scmp.ne.s32.totalorder %s59, %s73
      %p75 = scmp.eq.s32.totalorder %s28, 0
      %p76 = por %p74, %p75
      %s78 = sadd.s32 %s77, 1
      %p81 = scmp.eq.s32.totalorder %s22, 1
      %p82 = scmp.ne.s32.totalorder %s77, %s79
      %p83 = scmp.eq.s32.totalorder %s22, 0
      %p84 = por %p82, %p83
      %p85 = scmp.ne.s32.totalorder %s77, %s79
      %p86 = scmp.eq.s32.totalorder %s27, 1
      %p87 = por %p85, %p86
      %p88 = scmp.ne.s32.totalorder %s79, %s80
      %p89 = scmp.eq.s32.totalorder %s27, 0
      %p90 = por %p88, %p89
      %p91 = scmp.ne.s32.totalorder %s79, %s80
      %p92 = scmp.eq.s32.totalorder %s28, 1
      %p93 = por %p91, %p92
      %p95 = scmp.ne.s32.totalorder %s80, %s94
      %p96 = scmp.eq.s32.totalorder %s28, 0
      %p97 = por %p95, %p96
      %s99 = sadd.s32 %s98, 1
      %p102 = scmp.eq.s32.totalorder %s22, 1
      %p103 = scmp.ne.s32.totalorder %s98, %s100
      %p104 = scmp.eq.s32.totalorder %s22, 0
      %p105 = por %p103, %p104
      %p106 = scmp.ne.s32.totalorder %s98, %s100
      %p107 = scmp.eq.s32.totalorder %s27, 1
      %p108 = por %p106, %p107
      %p109 = scmp.ne.s32.totalorder %s100, %s101
      %p110 = scmp.eq.s32.totalorder %s27, 0
      %p111 = por %p109, %p110
      %p112 = scmp.ne.s32.totalorder %s100, %s101
      %p113 = scmp.eq.s32.totalorder %s28, 1
      %p114 = por %p112, %p113
      %p116 = scmp.ne.s32.totalorder %s101, %s115
      %p117 = scmp.eq.s32.totalorder %s28, 0
      %p118 = por %p116, %p117
      %s120 = sadd.s32 %s119, 1
      %p123 = scmp.eq.s32.totalorder %s22, 1
      %p124 = scmp.ne.s32.totalorder %s119, %s121
      %p125 = scmp.eq.s32.totalorder %s22, 0
      %p126 = por %p124, %p125
      %p127 = scmp.ne.s32.totalorder %s119, %s121
      %p128 = scmp.eq.s32.totalorder %s27, 1
      %p129 = por %p127, %p128
      %p130 = scmp.ne.s32.totalorder %s121, %s122
      %p131 = scmp.eq.s32.totalorder %s27, 0
      %p132 = por %p130, %p131
      %p133 = scmp.ne.s32.totalorder %s121, %s122
      %p134 = scmp.eq.s32.totalorder %s28, 1
      %p135 = por %p133, %p134
      %p137 = scmp.ne.s32.totalorder %s122, %s136
      %p138 = scmp.eq.s32.totalorder %s28, 0
      %p139 = por %p137, %p138
      %s141 = sadd.s32 %s140, 1
      %p144 = scmp.eq.s32.totalorder %s22, 1
      %p145 = scmp.ne.s32.totalorder %s140, %s142
      %p146 = scmp.eq.s32.totalorder %s22, 0
      %p147 = por %p145, %p146
      %p148 = scmp.ne.s32.totalorder %s140, %s142
      %p149 = scmp.eq.s32.totalorder %s27, 1
      %p150 = por %p148, %p149
      %p151 = scmp.ne.s32.totalorder %s142, %s143
      %p152 = scmp.eq.s32.totalorder %s27, 0
      %p153 = por %p151, %p152
      %p154 = scmp.ne.s32.totalorder %s142, %s143
      %p155 = scmp.eq.s32.totalorder %s28, 1
      %p156 = por %p154, %p155
      %p158 = scmp.ne.s32.totalorder %s143, %s157
      %p159 = scmp.eq.s32.totalorder %s28, 0
      %p160 = por %p158, %p159
      %s162 = sadd.s32 %s161, 1
      %p165 = scmp.eq.s32.totalorder %s22, 1
      %p166 = scmp.ne.s32.totalorder %s161, %s163
      %p167 = scmp.eq.s32.totalorder %s22, 0
      %p168 = por %p166, %p167
      %p169 = scmp.ne.s32.totalorder %s161, %s163
      %p170 = scmp.eq.s32.totalorder %s27, 1
      %p171 = por %p169, %p170
      %p172 = scmp.ne.s32.totalorder %s163, %s164
      %p173 = scmp.eq.s32.totalorder %s27, 0
      %p174 = por %p172, %p173
      %p175 = scmp.ne.s32.totalorder %s163, %s164
      %p176 = scmp.eq.s32.totalorder %s28, 1
      %p177 = por %p175, %p176
      %p179 = scmp.ne.s32.totalorder %s164, %s178
      %p180 = scmp.eq.s32.totalorder %s28, 0
      %p181 = por %p179, %p180
      %s183 = sadd.s32 %s182, 1
      %p186 = scmp.eq.s32.totalorder %s22, 1
      %p187 = scmp.ne.s32.totalorder %s182, %s184
      %p188 = scmp.eq.s32.totalorder %s22, 0
      %p189 = por %p187, %p188
      %p190 = scmp.ne.s32.totalorder %s182, %s184
      %p191 = scmp.eq.s32.totalorder %s27, 1
      %p192 = por %p190, %p191
      %p193 = scmp.ne.s32.totalorder %s184, %s185
      %p194 = scmp.eq.s32.totalorder %s27, 0
      %p195 = por %p193, %p194
      %p196 = scmp.ne.s32.totalorder %s184, %s185
      %p197 = scmp.eq.s32.totalorder %s28, 1
      %p198 = por %p196, %p197
      %p200 = scmp.ne.s32.totalorder %s185, %s199
      %p201 = scmp.eq.s32.totalorder %s28, 0
      %p202 = por %p200, %p201
      %s204 = sadd.s32 %s203, 1
      %p207 = scmp.eq.s32.totalorder %s22, 1
      %p208 = scmp.ne.s32.totalorder %s203, %s205
      %p209 = scmp.eq.s32.totalorder %s22, 0
      %p210 = por %p208, %p209
      %p211 = scmp.ne.s32.totalorder %s203, %s205
      %p212 = scmp.eq.s32.totalorder %s27, 1
      %p213 = por %p211, %p212
      %p214 = scmp.ne.s32.totalorder %s205, %s206
      %p215 = scmp.eq.s32.totalorder %s27, 0
      %p216 = por %p214, %p215
      %p217 = scmp.ne.s32.totalorder %s205, %s206
      %p218 = scmp.eq.s32.totalorder %s28, 1
      %p219 = por %p217, %p218
      %p221 = scmp.ne.s32.totalorder %s206, %s220
      %p222 = scmp.eq.s32.totalorder %s28, 0
      %p223 = por %p221, %p222
      %s225 = sadd.s32 %s224, 1
      %p228 = scmp.eq.s32.totalorder %s22, 1
      %p229 = scmp.ne.s32.totalorder %s224, %s226
      %p230 = scmp.eq.s32.totalorder %s22, 0
      %p231 = por %p229, %p230
      %p232 = scmp.ne.s32.totalorder %s224, %s226
      %p233 = scmp.eq.s32.totalorder %s27, 1
      %p234 = por %p232, %p233
      %p235 = scmp.ne.s32.totalorder %s226, %s227
      %p236 = scmp.eq.s32.totalorder %s27, 0
      %p237 = por %p235, %p236
      %p238 = scmp.ne.s32.totalorder %s226, %s227
      %p239 = scmp.eq.s32.totalorder %s28, 1
      %p240 = por %p238, %p239
      %p242 = scmp.ne.s32.totalorder %s227, %s241
      %p243 = scmp.eq.s32.totalorder %s28, 0
      %p244 = por %p242, %p243
      %s246 = sadd.s32 %s245, 1
      %p249 = scmp.eq.s32.totalorder %s22, 1
      %p250 = scmp.ne.s32.totalorder %s245, %s247
      %p251 = scmp.eq.s32.totalorder %s22, 0
      %p252 = por %p250, %p251
      %p253 = scmp.ne.s32.totalorder %s245, %s247
      %p254 = scmp.eq.s32.totalorder %s27, 1
      %p255 = por %p253, %p254
      %p256 = scmp.ne.s32.totalorder %s247, %s248
      %p257 = scmp.eq.s32.totalorder %s27, 0
      %p258 = por %p256, %p257
      %p259 = scmp.ne.s32.totalorder %s247, %s248
      %p260 = scmp.eq.s32.totalorder %s28, 1
      %p261 = por %p259, %p260
      %p263 = scmp.ne.s32.totalorder %s248, %s262
      %p264 = scmp.eq.s32.totalorder %s28, 0
      %p265 = por %p263, %p264
      %s267 = sadd.s32 %s266, 1
      %p270 = scmp.eq.s32.totalorder %s22, 1
      %p271 = scmp.ne.s32.totalorder %s266, %s268
      %p272 = scmp.eq.s32.totalorder %s22, 0
      %p273 = por %p271, %p272
      %p274 = scmp.ne.s32.totalorder %s266, %s268
      %p275 = scmp.eq.s32.totalorder %s27, 1
      %p276 = por %p274, %p275
      %p277 = scmp.ne.s32.totalorder %s268, %s269
      %p278 = scmp.eq.s32.totalorder %s27, 0
      %p279 = por %p277, %p278
      %p280 = scmp.ne.s32.totalorder %s268, %s269
      %p281 = scmp.eq.s32.totalorder %s28, 1
      %p282 = por %p280, %p281
      %p284 = scmp.ne.s32.totalorder %s269, %s283
      %p285 = scmp.eq.s32.totalorder %s28, 0
      %p286 = por %p284, %p285
      %s288 = sadd.s32 %s287, 1
      %p291 = scmp.eq.s32.totalorder %s22, 1
      %p292 = scmp.ne.s32.totalorder %s287, %s289
      %p293 = scmp.eq.s32.totalorder %s22, 0
      %p294 = por %p292, %p293
      %p295 = scmp.ne.s32.totalorder %s287, %s289
      %p296 = scmp.eq.s32.totalorder %s27, 1
      %p297 = por %p295, %p296
      %p298 = scmp.ne.s32.totalorder %s289, %s290
      %p299 = scmp.eq.s32.totalorder %s27, 0
      %p300 = por %p298, %p299
      %p301 = scmp.ne.s32.totalorder %s289, %s290
      %p302 = scmp.eq.s32.totalorder %s28, 1
      %p303 = por %p301, %p302
      %p305 = scmp.ne.s32.totalorder %s290, %s304
      %p306 = scmp.eq.s32.totalorder %s28, 0
      %p307 = por %p305, %p306
      %s308 = ssub.s32 %s22, %s29
      %p309 = scmp.eq.s32.totalorder %s308, 0
      %s311 = sadd.s32 %s310, 1
      %s312 = scalar_select %p309, %s310, %s311
      %p315 = pneg %p309
      %p316 = scmp.eq.s32.totalorder %s22, 1
      %p317 = por %p315, %p316
      %p318 = scmp.ne.s32.totalorder %s310, %s313
      %p319 = scmp.eq.s32.totalorder %s22, 0
      %p320 = por %p318, %p319
      %p321 = scmp.ne.s32.totalorder %s310, %s313
      %p322 = scmp.eq.s32.totalorder %s27, 1
      %p323 = por %p321, %p322
      %p324 = scmp.ne.s32.totalorder %s313, %s314
      %p325 = scmp.eq.s32.totalorder %s27, 0
      %p326 = por %p324, %p325
      %p327 = scmp.ne.s32.totalorder %s313, %s314
      %p328 = scmp.eq.s32.totalorder %s28, 1
      %p329 = por %p327, %p328
      %p331 = scmp.ne.s32.totalorder %s314, %s330
      %p332 = scmp.eq.s32.totalorder %s28, 0
      %p333 = por %p331, %p332
      %p334 = scmp.le.s32.totalorder 1, %s22
      %p335 = scmp.lt.s32.totalorder %s22, 3
      %p336 = pnand %p334, %p335
      %p337 = pneg %p336
      // Predicated region
      $region9: #{tpu_custom_call.1} parent=5 // pred_check
        _
      $region10: #{tpu_custom_call.1} parent=5 // pred_check_branch
        %339 = sbr.rel (%p336) target = $region12
      $region11: #{tpu_custom_call.1} parent=5 // pred_region
        %s340 = ssub.s32 %s22, 1
        // Predicated region
        $region13: #{tpu_custom_call.1} parent=11 // pred_check
          %p341 = pneg %p69
        $region14: #{tpu_custom_call.1} parent=11 // pred_check_branch
          %343 = sbr.rel (%p341) target = $region16
        $region15: #{tpu_custom_call.1} parent=11 // pred_region
          _
        $region16: #{tpu_custom_call.1} parent=11 // pred_fallthru
          _
        // Predicated region
        $region17: #{tpu_custom_call.1} parent=11 // pred_check
          %p344 = pneg %p90
        $region18: #{tpu_custom_call.1} parent=11 // pred_check_branch
          %346 = sbr.rel (%p344) target = $region20
        $region19: #{tpu_custom_call.1} parent=11 // pred_region
          _
        $region20: #{tpu_custom_call.1} parent=11 // pred_fallthru
          _
        // Predicated region
        $region21: #{tpu_custom_call.1} parent=11 // pred_check
          %p347 = pneg %p111
        $region22: #{tpu_custom_call.1} parent=11 // pred_check_branch
          %349 = sbr.rel (%p347) target = $region24
        $region23: #{tpu_custom_call.1} parent=11 // pred_region
          _
        $region24: #{tpu_custom_call.1} parent=11 // pred_fallthru
          _
        // Predicated region
        $region25: #{tpu_custom_call.1} parent=11 // pred_check
          %p350 = pneg %p132
        $region26: #{tpu_custom_call.1} parent=11 // pred_check_branch
          %352 = sbr.rel (%p350) target = $region28
        $region27: #{tpu_custom_call.1} parent=11 // pred_region
          _
        $region28: #{tpu_custom_call.1} parent=11 // pred_fallthru
          _
        // Predicated region
        $region29: #{tpu_custom_call.1} parent=11 // pred_check
          %p353 = pneg %p153
        $region30: #{tpu_custom_call.1} parent=11 // pred_check_branch
          %355 = sbr.rel (%p353) target = $region32
        $region31: #{tpu_custom_call.1} parent=11 // pred_region
          _
        $region32: #{tpu_custom_call.1} parent=11 // pred_fallthru
          _
        // Predicated region
        $region33: #{tpu_custom_call.1} parent=11 // pred_check
          %p356 = pneg %p174
        $region34: #{tpu_custom_call.1} parent=11 // pred_check_branch
          %358 = sbr.rel (%p356) target = $region36
        $region35: #{tpu_custom_call.1} parent=11 // pred_region
          _
        $region36: #{tpu_custom_call.1} parent=11 // pred_fallthru
          _
        // Predicated region
        $region37: #{tpu_custom_call.1} parent=11 // pred_check
          %p359 = pneg %p195
        $region38: #{tpu_custom_call.1} parent=11 // pred_check_branch
          %361 = sbr.rel (%p359) target = $region40
        $region39: #{tpu_custom_call.1} parent=11 // pred_region
          _
        $region40: #{tpu_custom_call.1} parent=11 // pred_fallthru
          _
        // Predicated region
        $region41: #{tpu_custom_call.1} parent=11 // pred_check
          %p362 = pneg %p216
        $region42: #{tpu_custom_call.1} parent=11 // pred_check_branch
          %364 = sbr.rel (%p362) target = $region44
        $region43: #{tpu_custom_call.1} parent=11 // pred_region
          _
        $region44: #{tpu_custom_call.1} parent=11 // pred_fallthru
          _
        // Predicated region
        $region45: #{tpu_custom_call.1} parent=11 // pred_check
          %p365 = pneg %p237
        $region46: #{tpu_custom_call.1} parent=11 // pred_check_branch
          %367 = sbr.rel (%p365) target = $region48
        $region47: #{tpu_custom_call.1} parent=11 // pred_region
          _
        $region48: #{tpu_custom_call.1} parent=11 // pred_fallthru
          _
        // Predicated region
        $region49: #{tpu_custom_call.1} parent=11 // pred_check
          %p368 = pneg %p258
        $region50: #{tpu_custom_call.1} parent=11 // pred_check_branch
          %370 = sbr.rel (%p368) target = $region52
        $region51: #{tpu_custom_call.1} parent=11 // pred_region
          _
        $region52: #{tpu_custom_call.1} parent=11 // pred_fallthru
          _
        // Predicated region
        $region53: #{tpu_custom_call.1} parent=11 // pred_check
          %p371 = pneg %p279
        $region54: #{tpu_custom_call.1} parent=11 // pred_check_branch
          %373 = sbr.rel (%p371) target = $region56
        $region55: #{tpu_custom_call.1} parent=11 // pred_region
          _
        $region56: #{tpu_custom_call.1} parent=11 // pred_fallthru
          _
        // Predicated region
        $region57: #{tpu_custom_call.1} parent=11 // pred_check
          %p374 = pneg %p300
        $region58: #{tpu_custom_call.1} parent=11 // pred_check_branch
          %376 = sbr.rel (%p374) target = $region60
        $region59: #{tpu_custom_call.1} parent=11 // pred_region
          _
        $region60: #{tpu_custom_call.1} parent=11 // pred_fallthru
          _
      $region12: #{tpu_custom_call.1} parent=5 // pred_fallthru
        _
      %p377 = scmp.lt.s32.totalorder %s22, 2
      // Predicated region
      $region61: #{tpu_custom_call.1} parent=5 // pred_check
        %p378 = pneg %p377
      $region62: #{tpu_custom_call.1} parent=5 // pred_check_branch
        %380 = sbr.rel (%p378) target = $region64
      $region63: #{tpu_custom_call.1} parent=5 // pred_region
        // Predicated region
        $region65: #{tpu_custom_call.1} parent=63 // pred_check
          %p381 = pneg %p42
        $region66: #{tpu_custom_call.1} parent=63 // pred_check_branch
          %383 = sbr.rel (%p381) target = $region68
        $region67: #{tpu_custom_call.1} parent=63 // pred_region
          %p384 = scmp.lt.s32.totalorder %s22, 1
          %s385 = scalar_select %p384, %s22, 1
          %s386 = smul.addr %s385, 8
          %s387 = scalar_lea.vmem %s0, %s386
        $region68: #{tpu_custom_call.1} parent=63 // pred_fallthru
          _
      $region64: #{tpu_custom_call.1} parent=5 // pred_fallthru
        _
      %p388 = scmp.le.s32.totalorder 1, %s22
      %p389 = scmp.lt.s32.totalorder %s22, 3
      %p390 = pnand %p388, %p389
      %p391 = pneg %p390
      // Predicated region
      $region69: #{tpu_custom_call.1} parent=5 // pred_check
        _
      $region70: #{tpu_custom_call.1} parent=5 // pred_check_branch
        %393 = sbr.rel (%p390) target = $region72
      $region71: #{tpu_custom_call.1} parent=5 // pred_region
        %s394 = ssub.s32 %s22, 1
        %p395 = scmp.lt.s32.totalorder %s27, 1
        %s396 = scalar_select %p395, %s27, 1
        %s397 = smul.addr %s396, 8
        %s398 = scalar_lea.vmem %s0, %s397
        %p399 = pneg %p48
        %p400 = pneg %p45
        %p401 = pneg %p69
        %p402 = pneg %p66
        %p403 = pneg %p90
        %p404 = pneg %p87
        %p405 = pneg %p111
        %p406 = pneg %p108
        %p407 = pneg %p132
        %p408 = pneg %p129
        %p409 = pneg %p153
        %p410 = pneg %p150
        %p411 = pneg %p174
        %p412 = pneg %p171
        %p413 = pneg %p195
        %p414 = pneg %p192
        %p415 = pneg %p216
        %p416 = pneg %p213
        %p417 = pneg %p237
        %p418 = pneg %p234
        %p419 = pneg %p258
        %p420 = pneg %p255
        %p421 = pneg %p279
        %p422 = pneg %p276
        %p423 = pneg %p300
        %p424 = pneg %p297
        %p425 = pneg %p326
        %p426 = pneg %p323
        %s427 = sand.u32 %s313, 1
        %s428 = scalar_lea.sflag [#allocation4], %s427
        %s429 = sand.u32 %s313, 1
        %s430 = smul.addr %s429, 8
        %s431 = scalar_lea.vmem [#allocation3], %s430
        %p432 = scmp.lt.s32.totalorder %s27, 1
        %s433 = scalar_select %p432, %s27, 1
        %s434 = smul.addr %s433, 8
        %s435 = scalar_lea.vmem %s0, %s434
        %v437 = vld [vmem:[%s435] sm:$0xff]
        %v438 = vld [vmem:[%s1] sm:$0x1]
        %v439 = vld [vmem:[%s2] sm:$0x1]
        %vm440 = vcmask 261120
        %v441 = vsel %vm440, %v437, 0.0
        %442 = vadd.xlane.f32.xlu0 %v441
        %v443 = vpop.xlane.xlu0 %442
        %v444 = vrcp.pop 32.0
        %v445 = vmul.f32 32.0, %v444
        %v446 = vsub.f32 1.0, %v445
        %v447 = vmul.f32 %v444, %v446
        %v448 = vadd.f32 %v444, %v447
        %vm449 = vweird.f32 %v444
        %v450 = vsel %vm449, %v444, %v448
        %v451 = vmul.f32 %v443, %v450
        %v452 = vsub.f32 %v437, %v451
        %v453 = vmul.f32 %v452, %v452
        %v454 = vsel %vm440, %v453, 0.0
        %455 = vadd.xlane.f32.xlu0 %v454
        %v456 = vpop.xlane.xlu0 %455
        %v457 = vmul.f32 %v456, %v450
        %v458 = vadd.f32 %v457, 1e-06
        %v459 = vrsqrt.pop %v458
        %v460 = vmul.f32 %v459, %v458
        %v461 = vmul.f32 %v460, %v459
        %v462 = vmul.f32 0.5, %v461
        %v463 = vsub.f32 1.5, %v462
        %v464 = vmul.f32 %v459, %v463
        %vm465 = vweird.f32 %v458
        %vm466 = vweird.f32 %v459
        %vm467 = vmor %vm465, %vm466
        %v468 = vsel %vm467, %v459, %v464
        %v469 = vmul.f32 %v452, %v468
        %v471 = vperm.slane %v438, 0
        %v473 = vmul.f32 %v469, %v471
        %v475 = vperm.slane %v439, 0
        %v477 = vadd.f32 %v473, %v475
        %v478 = vpack.c.bf16 %v477, %v477
        %v479 = vld [vmem:[%s3] sm:$0xf]
        %v480 = vld [vmem:[%s3 + $0x4] sm:$0xf]
        %v481 = vld [vmem:[%s3 + $0x8] sm:$0xf]
        %v482 = vld [vmem:[%s3 + $0xc] sm:$0xf]
        %v483 = vld [vmem:[%s4] sm:$0x1]
        %v485 = vperm.slane %v483, 0
        %v491 = vunpack.c.l.b16 %v479
        %v492 = vunpack.c.l.b16 %v480
        %v493 = vunpack.c.l.b16 %v481
        %v494 = vunpack.c.l.b16 %v482
        %v495 = vpack.c.b16 %v492, %v491
        %v496 = vpack.c.b16 %v494, %v493
        %v500 = vsel %vm440, %v478, 0
        %502 = vmatpush.bf16.msra.mxu0 0
        %503 = vmatpush.bf16.msra.mxu0 0
        %504 = vmatpush.bf16.msra.mxu0 0
        %505 = vmatpush.bf16.msra.mxu0 0
        %506 = vmatpush.bf16.msra.mxu0 0
        %507 = vmatpush.bf16.msra.mxu0 0
        %508 = vmatpush.bf16.msra.mxu0 %v496
        %509 = vmatpush.bf16.msra.mxu0 %v495
        %510 = vmatmul.bf16.gmra.mxu0 %v500
        %v511 = vpop.f32.mrf.mxu0
        %v512 = vadd.f32 %v485, %v511
        %v513 = vpop.f32.mrf.mxu0
        %514 = vdwg.mxu0
        %v515 = vlaneseq
        %v516 = vand.u32 %v515, 127
        %vm517 = vcmp.lt.s32.totalorder %v516, 32
        %v518 = vsel %vm517, 0.35355338, 1.0
        %v519 = vmul.f32 %v512, %v518
        %v520 = vpack.c.bf16 %v519, %v519
        %v522 = vunpack.c.l.b16 %v520
        %v523 = vpack.c.b16 %v522, %v522
        %524 = vrot.lane.b32.xlu0 %v523, 96
        %v525 = vpop.permute.xlu0 %524
        %vm526 = vcmask 64512
        %v528 = vsel %vm526, %v520, 0
        %v531 = vsel %vm526, %v525, 0
        %533 = vmatpush.bf16.xpose.msra.mxu0 0
        %534 = vmatpush.bf16.xpose.msra.mxu0 0
        %535 = vmatpush.bf16.xpose.msra.mxu0 0
        %536 = vmatpush.bf16.xpose.msra.mxu0 0
        %537 = vmatpush.bf16.xpose.msra.mxu0 0
        %538 = vmatpush.bf16.xpose.msra.mxu0 0
        %539 = vmatpush.bf16.xpose.msra.mxu0 0
        %540 = vmatpush.bf16.xpose.msra.mxu0 %v531
        %541 = vmatmul.bf16.gmra.mxu0 %v528
        %v542 = vpop.f32.mrf.mxu0
        %v543 = vadd.f32 0.0, %v542
        %v544 = vpop.f32.mrf.mxu0
        %545 = vdwg.mxu0
        %v546 = vsel %vm526, %v543, -inf
        %547 = vmax.xlane.f32.xlu0 %v546
        %v548 = vpop.xlane.xlu0 %547
        %v549 = vsub.f32 %v543, %v548
        %v550 = vmul.f32 %v549, 1.442695
        %v551 = vpow.pop %v550
        %v552 = vsel %vm526, %v551, 0.0
        %553 = vadd.xlane.f32.xlu0 %v552
        %v554 = vpop.xlane.xlu0 %553
        %v555 = vrcp.pop %v554
        %v556 = vmul.f32 %v551, %v555
        %v557 = vpack.c.bf16 %v556, %v556
        %558 = vrot.lane.b32.xlu0 %v523, 64
        %v559 = vpop.permute.xlu0 %558
        %v561 = vsel %vm526, %v557, 0
        %vm563 = vcmask 1043456
        %v565 = vsel %vm563, %v559, 0
        %567 = vmatpush.bf16.msra.mxu0 0
        %568 = vmatpush.bf16.msra.mxu0 0
        %569 = vmatpush.bf16.msra.mxu0 0
        %570 = vmatpush.bf16.msra.mxu0 0
        %571 = vmatpush.bf16.msra.mxu0 0
        %572 = vmatpush.bf16.msra.mxu0 0
        %573 = vmatpush.bf16.msra.mxu0 0
        %574 = vmatpush.bf16.msra.mxu0 %v565
        %575 = vmatmul.bf16.gmra.mxu0 %v561
        %v576 = vpop.f32.mrf.mxu0
        %v577 = vadd.f32 0.0, %v576
        %v578 = vpop.f32.mrf.mxu0
        %579 = vdwg.mxu0
        %v580 = vpack.c.bf16 %v577, %v577
        %vm581 = vcmask 60416
        %582 = vst.msk [vmem:[#allocation2] sm:$0xf] %vm581, %v580
        %583 = vrot.lane.b32.xlu0 %v523, 120
        %v584 = vpop.permute.xlu0 %583
        %585 = vrot.lane.b32.xlu0 %v523, 88
        %v586 = vpop.permute.xlu0 %585
        %v588 = vsel %vm526, %v584, 0
        %v591 = vsel %vm526, %v586, 0
        %593 = vmatpush.bf16.xpose.msra.mxu0 0
        %594 = vmatpush.bf16.xpose.msra.mxu0 0
        %595 = vmatpush.bf16.xpose.msra.mxu0 0
        %596 = vmatpush.bf16.xpose.msra.mxu0 0
        %597 = vmatpush.bf16.xpose.msra.mxu0 0
        %598 = vmatpush.bf16.xpose.msra.mxu0 0
        %599 = vmatpush.bf16.xpose.msra.mxu0 0
        %600 = vmatpush.bf16.xpose.msra.mxu0 %v591
        %601 = vmatmul.bf16.gmra.mxu0 %v588
        %v602 = vpop.f32.mrf.mxu0
        %v603 = vadd.f32 0.0, %v602
        %v604 = vpop.f32.mrf.mxu0
        %605 = vdwg.mxu0
        %v606 = vsel %vm526, %v603, -inf
        %607 = vmax.xlane.f32.xlu0 %v606
        %v608 = vpop.xlane.xlu0 %607
        %v609 = vsub.f32 %v603, %v608
        %v610 = vmul.f32 %v609, 1.442695
        %v611 = vpow.pop %v610
        %v612 = vsel %vm526, %v611, 0.0
        %613 = vadd.xlane.f32.xlu0 %v612
        %v614 = vpop.xlane.xlu0 %613
        %v615 = vrcp.pop %v614
        %v616 = vmul.f32 %v611, %v615
        %v617 = vpack.c.bf16 %v616, %v616
        %618 = vrot.lane.b32.xlu0 %v523, 56
        %v619 = vpop.permute.xlu0 %618
        %v621 = vsel %vm526, %v617, 0
        %v624 = vsel %vm563, %v619, 0
        %626 = vmatpush.bf16.msra.mxu0 0
        %627 = vmatpush.bf16.msra.mxu0 0
        %628 = vmatpush.bf16.msra.mxu0 0
        %629 = vmatpush.bf16.msra.mxu0 0
        %630 = vmatpush.bf16.msra.mxu0 0
        %631 = vmatpush.bf16.msra.mxu0 0
        %632 = vmatpush.bf16.msra.mxu0 0
        %633 = vmatpush.bf16.msra.mxu0 %v624
        %634 = vmatmul.bf16.gmra.mxu0 %v621
        %v635 = vpop.f32.mrf.mxu0
        %v636 = vadd.f32 0.0, %v635
        %v637 = vpop.f32.mrf.mxu0
        %638 = vdwg.mxu0
        %v639 = vpack.c.bf16 %v636, %v636
        %641 = vrot.lane.b32.xlu0 %v639, 8
        %v642 = vpop.permute.xlu0 %641
        %vm644 = vcmask 126016
        %645 = vst.msk [vmem:[#allocation2] sm:$0xf] %vm644, %v642
        %646 = vrot.lane.b32.xlu0 %v523, 112
        %v647 = vpop.permute.xlu0 %646
        %648 = vrot.lane.b32.xlu0 %v523, 80
        %v649 = vpop.permute.xlu0 %648
        %v651 = vsel %vm526, %v647, 0
        %v654 = vsel %vm526, %v649, 0
        %656 = vmatpush.bf16.xpose.msra.mxu0 0
        %657 = vmatpush.bf16.xpose.msra.mxu0 0
        %658 = vmatpush.bf16.xpose.msra.mxu0 0
        %659 = vmatpush.bf16.xpose.msra.mxu0 0
        %660 = vmatpush.bf16.xpose.msra.mxu0 0
        %661 = vmatpush.bf16.xpose.msra.mxu0 0
        %662 = vmatpush.bf16.xpose.msra.mxu0 0
        %663 = vmatpush.bf16.xpose.msra.mxu0 %v654
        %664 = vmatmul.bf16.gmra.mxu0 %v651
        %v665 = vpop.f32.mrf.mxu0
        %v666 = vadd.f32 0.0, %v665
        %v667 = vpop.f32.mrf.mxu0
        %668 = vdwg.mxu0
        %v669 = vsel %vm526, %v666, -inf
        %670 = vmax.xlane.f32.xlu0 %v669
        %v671 = vpop.xlane.xlu0 %670
        %v672 = vsub.f32 %v666, %v671
        %v673 = vmul.f32 %v672, 1.442695
        %v674 = vpow.pop %v673
        %v675 = vsel %vm526, %v674, 0.0
        %676 = vadd.xlane.f32.xlu0 %v675
        %v677 = vpop.xlane.xlu0 %676
        %v678 = vrcp.pop %v677
        %v679 = vmul.f32 %v674, %v678
        %v680 = vpack.c.bf16 %v679, %v679
        %681 = vrot.lane.b32.xlu0 %v523, 48
        %v682 = vpop.permute.xlu0 %681
        %v684 = vsel %vm526, %v680, 0
        %v687 = vsel %vm563, %v682, 0
        %689 = vmatpush.bf16.msra.mxu0 0
        %690 = vmatpush.bf16.msra.mxu0 0
        %691 = vmatpush.bf16.msra.mxu0 0
        %692 = vmatpush.bf16.msra.mxu0 0
        %693 = vmatpush.bf16.msra.mxu0 0
        %694 = vmatpush.bf16.msra.mxu0 0
        %695 = vmatpush.bf16.msra.mxu0 0
        %696 = vmatpush.bf16.msra.mxu0 %v687
        %697 = vmatmul.bf16.gmra.mxu0 %v684
        %v698 = vpop.f32.mrf.mxu0
        %v699 = vadd.f32 0.0, %v698
        %v700 = vpop.f32.mrf.mxu0
        %701 = vdwg.mxu0
        %v702 = vpack.c.bf16 %v699, %v699
        %704 = vrot.lane.b32.xlu0 %v702, 16
        %v705 = vpop.permute.xlu0 %704
        %vm707 = vcmask 191616
        %708 = vst.msk [vmem:[#allocation2] sm:$0xf] %vm707, %v705
        %709 = vrot.lane.b32.xlu0 %v523, 104
        %v710 = vpop.permute.xlu0 %709
        %711 = vrot.lane.b32.xlu0 %v523, 72
        %v712 = vpop.permute.xlu0 %711
        %v714 = vsel %vm526, %v710, 0
        %v717 = vsel %vm526, %v712, 0
        %719 = vmatpush.bf16.xpose.msra.mxu0 0
        %720 = vmatpush.bf16.xpose.msra.mxu0 0
        %721 = vmatpush.bf16.xpose.msra.mxu0 0
        %722 = vmatpush.bf16.xpose.msra.mxu0 0
        %723 = vmatpush.bf16.xpose.msra.mxu0 0
        %724 = vmatpush.bf16.xpose.msra.mxu0 0
        %725 = vmatpush.bf16.xpose.msra.mxu0 0
        %726 = vmatpush.bf16.xpose.msra.mxu0 %v717
        %727 = vmatmul.bf16.gmra.mxu0 %v714
        %v728 = vpop.f32.mrf.mxu0
        %v729 = vadd.f32 0.0, %v728
        %v730 = vpop.f32.mrf.mxu0
        %731 = vdwg.mxu0
        %v732 = vsel %vm526, %v729, -inf
        %733 = vmax.xlane.f32.xlu0 %v732
        %v734 = vpop.xlane.xlu0 %733
        %v735 = vsub.f32 %v729, %v734
        %v736 = vmul.f32 %v735, 1.442695
        %v737 = vpow.pop %v736
        %v738 = vsel %vm526, %v737, 0.0
        %739 = vadd.xlane.f32.xlu0 %v738
        %v740 = vpop.xlane.xlu0 %739
        %v741 = vrcp.pop %v740
        %v742 = vmul.f32 %v737, %v741
        %v743 = vpack.c.bf16 %v742, %v742
        %744 = vrot.lane.b32.xlu0 %v523, 40
        %v745 = vpop.permute.xlu0 %744
        %v747 = vsel %vm526, %v743, 0
        %v750 = vsel %vm563, %v745, 0
        %752 = vmatpush.bf16.msra.mxu0 0
        %753 = vmatpush.bf16.msra.mxu0 0
        %754 = vmatpush.bf16.msra.mxu0 0
        %755 = vmatpush.bf16.msra.mxu0 0
        %756 = vmatpush.bf16.msra.mxu0 0
        %757 = vmatpush.bf16.msra.mxu0 0
        %758 = vmatpush.bf16.msra.mxu0 0
        %759 = vmatpush.bf16.msra.mxu0 %v750
        %760 = vmatmul.bf16.gmra.mxu0 %v747
        %v761 = vpop.f32.mrf.mxu0
        %v762 = vadd.f32 0.0, %v761
        %v763 = vpop.f32.mrf.mxu0
        %764 = vdwg.mxu0
        %v765 = vpack.c.bf16 %v762, %v762
        %767 = vrot.lane.b32.xlu0 %v765, 24
        %v768 = vpop.permute.xlu0 %767
        %vm770 = vcmask 257216
        %771 = vst.msk [vmem:[#allocation2] sm:$0xf] %vm770, %v768
        %v772 = vld [vmem:[#allocation2] sm:$0xf]
        %v773 = vld [vmem:[%s5] sm:$0xf]
        %v774 = vld [vmem:[%s5 + $0x4] sm:$0xf]
        %v775 = vld [vmem:[%s5 + $0x8] sm:$0xf]
        %v776 = vld [vmem:[%s5 + $0xc] sm:$0xf]
        %v781 = vunpack.c.l.b16 %v773
        %v782 = vunpack.c.l.b16 %v774
        %v783 = vunpack.c.l.b16 %v775
        %v784 = vunpack.c.l.b16 %v776
        %v785 = vpack.c.b16 %v782, %v781
        %v786 = vpack.c.b16 %v784, %v783
        %v790 = vsel %vm440, %v772, 0
        %792 = vmatpush.bf16.msra.mxu0 0
        %793 = vmatpush.bf16.msra.mxu0 0
        %794 = vmatpush.bf16.msra.mxu0 0
        %795 = vmatpush.bf16.msra.mxu0 0
        %796 = vmatpush.bf16.msra.mxu0 0
        %797 = vmatpush.bf16.msra.mxu0 0
        %798 = vmatpush.bf16.msra.mxu0 %v786
        %799 = vmatpush.bf16.msra.mxu0 %v785
        %800 = vmatmul.bf16.gmra.mxu0 %v790
        %v801 = vpop.f32.mrf.mxu0
        %v802 = vadd.f32 0.0, %v801
        %v803 = vpop.f32.mrf.mxu0
        %804 = vdwg.mxu0
        %v805 = vadd.f32 %v437, %v802
        %v806 = vld [vmem:[%s6] sm:$0x1]
        %v808 = vperm.slane %v806, 0
        %v810 = vadd.f32 %v805, %v808
        %v811 = vld [vmem:[%s7] sm:$0x1]
        %v812 = vld [vmem:[%s8] sm:$0x1]
        %v813 = vsel %vm440, %v810, 0.0
        %814 = vadd.xlane.f32.xlu0 %v813
        %v815 = vpop.xlane.xlu0 %814
        %v816 = vmul.f32 %v815, %v450
        %v817 = vsub.f32 %v810, %v816
        %v818 = vmul.f32 %v817, %v817
        %v819 = vsel %vm440, %v818, 0.0
        %820 = vadd.xlane.f32.xlu0 %v819
        %v821 = vpop.xlane.xlu0 %820
        %v822 = vmul.f32 %v821, %v450
        %v823 = vadd.f32 %v822, 1e-06
        %v824 = vrsqrt.pop %v823
        %v825 = vmul.f32 %v824, %v823
        %v826 = vmul.f32 %v825, %v824
        %v827 = vmul.f32 0.5, %v826
        %v828 = vsub.f32 1.5, %v827
        %v829 = vmul.f32 %v824, %v828
        %vm830 = vweird.f32 %v823
        %vm831 = vweird.f32 %v824
        %vm832 = vmor %vm830, %vm831
        %v833 = vsel %vm832, %v824, %v829
        %v834 = vmul.f32 %v817, %v833
        %v836 = vperm.slane %v811, 0
        %v838 = vmul.f32 %v834, %v836
        %v840 = vperm.slane %v812, 0
        %v842 = vadd.f32 %v838, %v840
        %v843 = vpack.c.bf16 %v842, %v842
        %v844 = vld [vmem:[%s9] sm:$0xf]
        %v845 = vld [vmem:[%s9 + $0x4] sm:$0xf]
        %v846 = vld [vmem:[%s9 + $0x8] sm:$0xf]
        %v847 = vld [vmem:[%s9 + $0xc] sm:$0xf]
        %v848 = vld [vmem:[%s10] sm:$0x1]
        %v850 = vperm.slane %v848, 0
        %v856 = vunpack.c.l.b16 %v844
        %v857 = vunpack.c.l.b16 %v845
        %v858 = vunpack.c.l.b16 %v846
        %v859 = vunpack.c.l.b16 %v847
        %v860 = vpack.c.b16 %v857, %v856
        %v861 = vpack.c.b16 %v859, %v858
        %v865 = vsel %vm440, %v843, 0
        %867 = vmatpush.bf16.msra.mxu0 0
        %868 = vmatpush.bf16.msra.mxu0 0
        %869 = vmatpush.bf16.msra.mxu0 0
        %870 = vmatpush.bf16.msra.mxu0 0
        %871 = vmatpush.bf16.msra.mxu0 0
        %872 = vmatpush.bf16.msra.mxu0 0
        %873 = vmatpush.bf16.msra.mxu0 %v861
        %874 = vmatpush.bf16.msra.mxu0 %v860
        %875 = vmatmul.bf16.gmra.mxu0 %v865
        %v876 = vpop.f32.mrf.mxu0
        %v877 = vadd.f32 %v850, %v876
        %v878 = vpop.f32.mrf.mxu0
        %879 = vdwg.mxu0
        %v880 = vmul.f32 %v877, 0.5
        %v881 = vmul.f32 %v877, 0.70710677
        %v882 = vmul.f32 %v881, %v881
        %v883 = vmin.f32 16.0, %v882
        %v884 = vmul.f32 %v883, 2.1237322e-06
        %v885 = vadd.f32 %v884, 0.00028619796
        %v886 = vmul.f32 %v883, %v885
        %v887 = vadd.f32 %v886, 0.0036580483
        %v888 = vmul.f32 %v883, %v887
        %v889 = vadd.f32 %v888, 0.05243302
        %v890 = vmul.f32 %v883, %v889
        %v891 = vadd.f32 %v890, 0.18741608
        %v892 = vmul.f32 %v883, %v891
        %v893 = vadd.f32 %v892, 1.1283791
        %v894 = vmul.f32 %v881, %v893
        %v895 = vmul.f32 %v883, 3.8918573e-05
        %v896 = vadd.f32 %v895, 0.001143296
        %v897 = vmul.f32 %v883, %v896
        %v898 = vadd.f32 %v897, 0.014752088
        %v899 = vmul.f32 %v883, %v898
        %v900 = vadd.f32 %v899, 0.112945676
        %v901 = vmul.f32 %v883, %v900
        %v902 = vadd.f32 %v901, 0.4994258
        %v903 = vmul.f32 %v883, %v902
        %v904 = vadd.f32 %v903, 1.0
        %v905 = vrcp.pop %v904
        %v906 = vmul.f32 %v904, %v905
        %v907 = vsub.f32 1.0, %v906
        %v908 = vmul.f32 %v905, %v907
        %v909 = vadd.f32 %v905, %v908
        %vm910 = vweird.f32 %v904
        %vm911 = vweird.f32 %v905
        %vm912 = vmor %vm910, %vm911
        %v913 = vsel %vm912, %v905, %v909
        %v914 = vand.u32 2147483647, %v904
        %vm915 = vcmp.eq.f32.partialorder %v914, 8.507059e+37
        %v916 = vand.u32 %v904, 2147483648
        %v917 = vor.u32 1.1754944e-38, %v916
        %v918 = vsel %vm915, %v917, %v913
        %v919 = vmul.f32 %v894, %v918
        %v920 = vmin.f32 %v919, 1.0
        %v921 = vmax.f32 %v920, -1.0
        %v922 = vadd.f32 %v921, 1.0
        %v923 = vmul.f32 %v880, %v922
        %v924 = vpack.c.bf16 %v923, %v923
        %v925 = vld [vmem:[%s11] sm:$0xf]
        %v926 = vld [vmem:[%s11 + $0x4] sm:$0xf]
        %v927 = vld [vmem:[%s11 + $0x8] sm:$0xf]
        %v928 = vld [vmem:[%s11 + $0xc] sm:$0xf]
        %v929 = vld [vmem:[%s11 + $0x10] sm:$0xf]
        %v930 = vld [vmem:[%s11 + $0x14] sm:$0xf]
        %v931 = vld [vmem:[%s11 + $0x18] sm:$0xf]
        %v932 = vld [vmem:[%s11 + $0x1c] sm:$0xf]
        %v933 = vld [vmem:[%s11 + $0x20] sm:$0xf]
        %v934 = vld [vmem:[%s11 + $0x24] sm:$0xf]
        %v935 = vld [vmem:[%s11 + $0x28] sm:$0xf]
        %v936 = vld [vmem:[%s11 + $0x2c] sm:$0xf]
        %v937 = vld [vmem:[%s11 + $0x30] sm:$0xf]
        %v938 = vld [vmem:[%s11 + $0x34] sm:$0xf]
        %v939 = vld [vmem:[%s11 + $0x38] sm:$0xf]
        %v940 = vld [vmem:[%s11 + $0x3c] sm:$0xf]
        %v941 = vld [vmem:[%s12] sm:$0x1]
        %v943 = vperm.slane %v941, 0
        %v961 = vunpack.c.l.b16 %v925
        %v962 = vunpack.c.l.b16 %v926
        %v963 = vunpack.c.l.b16 %v927
        %v964 = vunpack.c.l.b16 %v928
        %v965 = vunpack.c.l.b16 %v929
        %v966 = vunpack.c.l.b16 %v930
        %v967 = vunpack.c.l.b16 %v931
        %v968 = vunpack.c.l.b16 %v932
        %v969 = vunpack.c.l.b16 %v933
        %v970 = vunpack.c.l.b16 %v934
        %v971 = vunpack.c.l.b16 %v935
        %v972 = vunpack.c.l.b16 %v936
        %v973 = vunpack.c.l.b16 %v937
        %v974 = vunpack.c.l.b16 %v938
        %v975 = vunpack.c.l.b16 %v939
        %v976 = vunpack.c.l.b16 %v940
        %v977 = vpack.c.b16 %v962, %v961
        %v978 = vpack.c.b16 %v964, %v963
        %v979 = vpack.c.b16 %v966, %v965
        %v980 = vpack.c.b16 %v968, %v967
        %v981 = vpack.c.b16 %v970, %v969
        %v982 = vpack.c.b16 %v972, %v971
        %v983 = vpack.c.b16 %v974, %v973
        %v984 = vpack.c.b16 %v976, %v975
        %993 = vmatpush.bf16.msra.mxu0 %v984
        %994 = vmatpush.bf16.msra.mxu0 %v983
        %995 = vmatpush.bf16.msra.mxu0 %v982
        %996 = vmatpush.bf16.msra.mxu0 %v981
        %997 = vmatpush.bf16.msra.mxu0 %v980
        %998 = vmatpush.bf16.msra.mxu0 %v979
        %999 = vmatpush.bf16.msra.mxu0 %v978
        %1000 = vmatpush.bf16.msra.mxu0 %v977
        %1001 = vmatmul.bf16.gmra.mxu0 %v924
        %v1002 = vpop.f32.mrf.mxu0
        %v1003 = vadd.f32 %v943, %v1002
        %v1004 = vpop.f32.mrf.mxu0
        %1005 = vdwg.mxu0
        %v1006 = vadd.f32 %v810, %v1003
        %1007 = vst.msk [vmem:[%s431] sm:$0xff] %vm440, %v1006
        %s1008 = sand.u32 %s313, 1
        %s1009 = scalar_lea.sflag [#allocation4], %s1008
        %s1010 = sand.u32 %s313, 1
        %s1011 = smul.addr %s1010, 8
        %s1012 = scalar_lea.vmem [#allocation3], %s1011
        // Predicated region
        $region73: #{tpu_custom_call.1} parent=71 // pred_check
          %p1013 = pneg %p323
        $region74: #{tpu_custom_call.1} parent=71 // pred_check_branch
          %1015 = sbr.rel (%p1013) target = $region76
        $region75: #{tpu_custom_call.1} parent=71 // pred_region
          %1017 = vsyncadd %s1009, 0
          %s1018 = smul.addr %s27, 8
          %s1019 = scalar_lea.hbm %s13, %s1018
          %s1021 = sshll.u32 %s1012, 4
          %s1022 = int_to_ptr.vmem [resolvable:$true] %s1021
          %s1023 = sshll.u32 %s1019, 4
          %s1024 = int_to_ptr.hbm [resolvable:$true] %s1023
          %1026 = dma.vmem_to_hbm [thread:$0]  %s1022, 128, %s1024, %s1009
        $region76: #{tpu_custom_call.1} parent=71 // pred_fallthru
          _
      $region72: #{tpu_custom_call.1} parent=5 // pred_fallthru
        _
      %p1027 = scmp.le.s32.totalorder 2, %s22
      // Predicated region
      $region77: #{tpu_custom_call.1} parent=5 // pred_check
        %p1028 = pneg %p1027
      $region78: #{tpu_custom_call.1} parent=5 // pred_check_branch
        %1030 = sbr.rel (%p1028) target = $region80
      $region79: #{tpu_custom_call.1} parent=5 // pred_region
        %s1031 = ssub.s32 %s22, 2
        // Predicated region
        $region81: #{tpu_custom_call.1} parent=79 // pred_check
          %p1032 = pneg %p329
        $region82: #{tpu_custom_call.1} parent=79 // pred_check_branch
          %1034 = sbr.rel (%p1032) target = $region84
        $region83: #{tpu_custom_call.1} parent=79 // pred_region
          %s1035 = sand.u32 %s314, 1
          %s1036 = scalar_lea.sflag [#allocation4], %s1035
          %s1037 = sand.u32 %s314, 1
          %s1038 = smul.addr %s1037, 8
          %s1039 = scalar_lea.vmem [#allocation3], %s1038
          %1041 = dma.done %s1036, 128
        $region84: #{tpu_custom_call.1} parent=79 // pred_fallthru
          _
      $region80: #{tpu_custom_call.1} parent=5 // pred_fallthru
        _
    $region6: #{tpu_custom_call.1} parent=1 // loop_footer
      %s26 = sadd.s32 1, %s22
    $region7: #{tpu_custom_call.1} parent=1 // loop_footer_branch
      %21 = sbr.rel target = $region3
    $region8: #{tpu_custom_call.1} parent=1 // loop_exit
      _
    %1042 = vsyncpa [#allocation4], 1
    %s1043 = scalar_lea.sflag [#allocation4], 1
    %1044 = vsyncpa %s1043, 1

</llo_original>
